<compile_context>
chip_gen: v7x
topology: tpu7x:2x2x1
jax: 0.10.0
libtpu: 0.0.40
codegen_flags: <defaults>
</compile_context>

<pallas_src>
import functools
import math

import jax
import jax.numpy as jnp
from jax.experimental import pallas as pl
from jax.experimental.pallas import tpu as pltpu

# ---- hyperparameters (small, consistent with the module) -------------------
EMB_D = 16
EMB_D_KEYCODE = 15
D = EMB_D + EMB_D_KEYCODE + 1          # emb_d_total = 32 (divisible by n_head)
N_HEAD = 2
HEAD_DIM = D // N_HEAD                 # 16
N_HID = 128
N_LAYERS = 3
LN_EPS = 1e-5
N_KEYCODES = 2257

FUSED_W = (2 + N_HEAD) * D             # Q | K | V'_h0 | V'_h1  -> 128 lanes
PAD_W = max(FUSED_W, N_HID)            # 128


# ---- Pallas kernel: pos-encoding add + full transformer encoder stack ------
def _transformer_kernel(x_ref, pe_ref, wf_ref, w1_ref, w2_ref,
                        b128_ref, sm_ref, out_ref, *, l_real):
    TB, Lp, _ = x_ref.shape
    N = TB * Lp
    bf16 = jnp.bfloat16

    # PositionalEncoding forward: scale by sqrt(d_model) and add sinusoid table
    x3 = x_ref[...] * jnp.float32(math.sqrt(D)) + pe_ref[...]          # [TB, Lp, D]
    # TODO(synk): dropout omitted (eval-mode semantics)

    # flatten batch*seq for all dense projections (tile-aligned: Lp % 8 == 0)
    x = x3.reshape(N, D)                                               # [N, D] f32

    # attention mask for padded key positions (static l_real), kept in f32
    if l_real < Lp:
        key_pos = jax.lax.broadcasted_iota(jnp.int32, (Lp, Lp), 1)
        neg_mask = jnp.where(key_pos >= l_real,
                             jnp.float32(-1e30), jnp.float32(0.0))     # [Lp, Lp]
    else:
        neg_mask = None

    def layernorm(y, w, b):                                            # f32
        mu = jnp.mean(y, axis=-1, keepdims=True)
        var = jnp.mean((y - mu) ** 2, axis=-1, keepdims=True)
        return (y - mu) * jax.lax.rsqrt(var + LN_EPS) * w + b

    inv_sqrt_hd = jnp.float32(1.0 / math.sqrt(HEAD_DIM))

    for l in range(N_LAYERS):                                          # static unroll (3)
        b128 = b128_ref[l]                      # (2, PAD_W): fused-proj bias | ffn bias1
        sm = sm_ref[l]                          # (6, D): bo, ln1w, ln1b, ln2w, ln2b, b2

        # fused projection [Q | K | V'_h...] — bf16 operands, f32 accumulate
        qkv = jnp.dot(x.astype(bf16), wf_ref[l],
                      preferred_element_type=jnp.float32) + b128[0:1, :FUSED_W]

        # multi-head self-attention, batched over TB; Wo is pre-folded into V'
        attn3 = None
        for h in range(N_HEAD):                                        # static unroll (2)
            qh = qkv[:, h * HEAD_DIM:(h + 1) * HEAD_DIM].reshape(TB, Lp, HEAD_DIM)
            kh = qkv[:, D + h * HEAD_DIM:D + (h + 1) * HEAD_DIM].reshape(TB, Lp, HEAD_DIM)
            vh = qkv[:, 2 * D + h * D:2 * D + (h + 1) * D].reshape(TB, Lp, D)
            s = jnp.einsum('bld,bmd->blm', qh.astype(bf16), kh.astype(bf16),
                           preferred_element_type=jnp.float32) * inv_sqrt_hd
            if neg_mask is not None:
                s = s + neg_mask                                       # mask padded keys (f32)
            s = s - jnp.max(s, axis=-1, keepdims=True)
            p = jnp.exp(s)
            p = p * pl.reciprocal(jnp.sum(p, axis=-1, keepdims=True), approx=True)
            oh = jnp.einsum('blm,bmd->bld', p.astype(bf16), vh.astype(bf16),
                            preferred_element_type=jnp.float32)        # [TB, Lp, D]
            attn3 = oh if attn3 is None else attn3 + oh
        attn = attn3.reshape(N, D) + sm[0:1, :]                        # + bo

        # post-norm encoder layer (PyTorch default norm_first=False)
        x = layernorm(x + attn, sm[1:2, :], sm[2:3, :])

        h1 = jnp.dot(x.astype(bf16), w1_ref[l],
                     preferred_element_type=jnp.float32) + b128[1:2, :N_HID]
        h1 = jnp.maximum(h1, 0.0)                                      # ReLU
        ff = jnp.dot(h1.astype(bf16), w2_ref[l],
                     preferred_element_type=jnp.float32) + sm[5:6, :]
        x = layernorm(x + ff, sm[3:4, :], sm[4:5, :])

    # emit output unpadded in seq (masked store; no wrapper-side slice copy)
    out_ref[...] = x.reshape(TB, Lp, D)[:, :l_real, :]


# ---- glue: positional-encoding table, parameter init, wrapper --------------
def positional_encoding(seq_len, d_model):
    position = jnp.arange(seq_len, dtype=jnp.float32)[:, None]
    div_term = jnp.exp(jnp.arange(0, d_model, 2, dtype=jnp.float32)
                       * (-math.log(10000.0) / d_model))
    pe = jnp.zeros((seq_len, d_model), jnp.float32)
    pe = pe.at[:, 0::2].set(jnp.sin(position * div_term))
    pe = pe.at[:, 1::2].set(jnp.cos(position * div_term))
    return pe


def init_params(key):
    ks = jax.random.split(key, 8)
    u = lambda k, shape, r: jax.random.uniform(k, shape, jnp.float32, -r, r)
    params = {
        # embeddings: uniform(-0.1, 0.1) as in init_weights()
        "ki_emb": u(ks[0], (2, EMB_D), 0.1),
        "kc_emb": u(ks[1], (N_KEYCODES, EMB_D_KEYCODE), 0.1),
        "ki_zero": jnp.zeros((D,), jnp.float32),
        # transformer layer weights (PyTorch [out, in] convention), stacked over layers
        "wqkv": u(ks[2], (N_LAYERS, 3 * D, D), 1.0 / math.sqrt(D)),
        "bqkv": jnp.zeros((N_LAYERS, 1, 3 * D), jnp.float32),
        "wo":   u(ks[3], (N_LAYERS, D, D), 1.0 / math.sqrt(D)),
        "bo":   jnp.zeros((N_LAYERS, 1, D), jnp.float32),
        "ln1w": jnp.ones((N_LAYERS, 1, D), jnp.float32),
        "ln1b": jnp.zeros((N_LAYERS, 1, D), jnp.float32),
        "ln2w": jnp.ones((N_LAYERS, 1, D), jnp.float32),
        "ln2b": jnp.zeros((N_LAYERS, 1, D), jnp.float32),
        "w1":   u(ks[4], (N_LAYERS, N_HID, D), 1.0 / math.sqrt(D)),
        "b1":   jnp.zeros((N_LAYERS, 1, N_HID), jnp.float32),
        "w2":   u(ks[5], (N_LAYERS, D, N_HID), 1.0 / math.sqrt(N_HID)),
        "b2":   jnp.zeros((N_LAYERS, 1, D), jnp.float32),
    }
    return params


def _pick_tb(B, Lp):
    """Batch tile: VMEM-aware, >= 2 grid steps when possible, divides B exactly."""
    per_b = (4 * Lp * D * 4                 # x in/out blocks, double-buffered (f32)
             + Lp * FUSED_W * (4 + 2)       # fused qkv f32 + bf16 copies
             + 2 * Lp * Lp * 4              # scores + probs (one head at a time)
             + Lp * N_HID * (4 + 2)         # ffn hidden f32 + bf16
             + 4 * Lp * D * 4)              # residual / layernorm temporaries
    budget = 24 * 1024 * 1024               # conservative: fits v7x 64 MiB VMEM
    cap = int(max(1, min(budget // per_b, 128)))
    if B >= 2:
        cap = min(cap, (B + 1) // 2)        # >= 2 grid steps: v7x has 2 TensorCores
    tb = 1
    for d in range(1, min(cap, B) + 1):     # largest divisor of B (no batch padding)
        if B % d == 0:
            tb = d
    return tb


def _prep_weights(params):
    """Pre-transpose, fold Wo into V, pack small per-layer params, cast to bf16."""
    NL = N_LAYERS
    wqkv = params["wqkv"]                                  # (NL, 3D, D), [out, in]
    bqkv = params["bqkv"].reshape(NL, 3 * D)
    wo_t = jnp.swapaxes(params["wo"], 1, 2)                # (NL, D, D)
    bo = params["bo"].reshape(NL, D)

    wq_t = jnp.swapaxes(wqkv[:, 0 * D:1 * D, :], 1, 2)     # (NL, D, D)
    wk_t = jnp.swapaxes(wqkv[:, 1 * D:2 * D, :], 1, 2)
    wv_t = jnp.swapaxes(wqkv[:, 2 * D:3 * D, :], 1, 2)

    w_parts = [wq_t, wk_t]
    b_parts = [bqkv[:, 0:D], bqkv[:, D:2 * D]]
    for h in range(N_HEAD):
        sl = slice(h * HEAD_DIM, (h + 1) * HEAD_DIM)
        wo_h = wo_t[:, sl, :]                              # (NL, hd, D)
        w_parts.append(jnp.einsum('lik,lkj->lij', wv_t[:, :, sl], wo_h))   # (NL, D, D)
        bv_h = bqkv[:, 2 * D + h * HEAD_DIM:2 * D + (h + 1) * HEAD_DIM]    # (NL, hd)
        b_parts.append(jnp.einsum('lk,lkj->lj', bv_h, wo_h))               # (NL, D)
    w_fused = jnp.concatenate(w_parts, axis=2).astype(jnp.bfloat16)        # (NL, D, 128)
    b_fused = jnp.concatenate(b_parts, axis=1)                             # (NL, 128) f32

    padw = lambda a: a if a.shape[1] == PAD_W else jnp.pad(a, ((0, 0), (0, PAD_W - a.shape[1])))
    bias128 = jnp.stack([padw(b_fused),
                         padw(params["b1"].reshape(NL, N_HID))], axis=1)   # (NL, 2, 128)

    small32 = jnp.stack([bo,
                         params["ln1w"].reshape(NL, D), params["ln1b"].reshape(NL, D),
                         params["ln2w"].reshape(NL, D), params["ln2b"].reshape(NL, D),
                         params["b2"].reshape(NL, D)], axis=1)             # (NL, 6, D)

    w1_t = jnp.swapaxes(params["w1"], 1, 2).astype(jnp.bfloat16)           # (NL, D, N_HID)
    w2_t = jnp.swapaxes(params["w2"], 1, 2).astype(jnp.bfloat16)           # (NL, N_HID, D)
    return w_fused, w1_t, w2_t, bias128, small32


def key_id_encoder(src, params):
    # --- embedding lookups / concat / zero-token append: plain-JAX glue -----
    ev = params["ki_emb"][src["eventType"]]                    # [B, S, emb_d]
    kc = params["kc_emb"][src["keyCode"]]                      # [B, S, emb_d_keycode]
    ti = jnp.clip(src["timeInterval"][..., None] / 1000.0, 0.0, 1.0).astype(jnp.float32)
    inp = jnp.concatenate([ev, kc, ti], axis=-1)               # [B, S, D]
    B, S, _ = inp.shape
    ki_zero = jnp.broadcast_to(params["ki_zero"][None, None, :], (B, 1, D))
    inp = jnp.concatenate([inp, ki_zero], axis=1)              # [B, L, D]
    L = S + 1

    # pad only the seq dim to a multiple of 8 (tile-aligned in-kernel reshapes;
    # padded keys masked in attention).  Batch is NOT padded: TB divides B.
    L_pad = ((L + 7) // 8) * 8
    x = inp if L_pad == L else jnp.pad(inp, ((0, 0), (0, L_pad - L), (0, 0)))
    pe = positional_encoding(L_pad, D)                         # [L_pad, D]

    TB = _pick_tb(B, L_pad)
    w_fused, w1_t, w2_t, bias128, small32 = _prep_weights(params)

    full = lambda *shape: pl.BlockSpec(shape, lambda b: (0,) * len(shape))
    kernel = functools.partial(_transformer_kernel, l_real=L)

    out = pl.pallas_call(
        kernel,
        out_shape=jax.ShapeDtypeStruct((B, L, D), jnp.float32),   # unpadded output
        grid=(B // TB,),
        in_specs=[
            pl.BlockSpec((TB, L_pad, D), lambda b: (b, 0, 0)),    # x: TB batch elems / step
            full(L_pad, D),                                       # pe (resident)
            full(N_LAYERS, D, FUSED_W),                           # fused [Q|K|V'] weights (bf16)
            full(N_LAYERS, D, N_HID),                             # ffn linear1 (bf16)
            full(N_LAYERS, N_HID, D),                             # ffn linear2 (bf16)
            full(N_LAYERS, 2, PAD_W),                             # packed wide biases
            full(N_LAYERS, 6, D),                                 # packed narrow params
        ],
        out_specs=pl.BlockSpec((TB, L, D), lambda b: (b, 0, 0)),
        compiler_params=pltpu.CompilerParams(
            dimension_semantics=("parallel",),
            vmem_limit_bytes=48 * 1024 * 1024),
    )(x, pe, w_fused, w1_t, w2_t, bias128, small32)

    return out                                                   # [B, S+1, D]


if __name__ == "__main__":
    key = jax.random.PRNGKey(0)
    k_p, k_e, k_k, k_t = jax.random.split(key, 4)

    B, S = 2, 8
    params = init_params(k_p)
    src = {
        "eventType": jax.random.randint(k_e, (B, S), 0, 2),
        "keyCode": jax.random.randint(k_k, (B, S), 0, N_KEYCODES),
        "timeInterval": jax.random.uniform(k_t, (B, S), jnp.float32, 0.0, 2000.0),
    }

    out = key_id_encoder(src, params)
    out = jax.block_until_ready(out)
    assert out.shape == (B, S + 1, D)
    assert bool(jnp.all(jnp.isfinite(out)))
    print("KERNEL_OK")
</pallas_src>

<mosaic_0001>
module attributes {stable_mosaic.version = 11 : i64} {
  func.func @_transformer_kernel(%arg0: i32, %arg1: memref<1x16x32xf32, #tpu.memory_space<vmem>>, %arg2: memref<16x32xf32, #tpu.memory_space<vmem>>, %arg3: memref<3x32x128xbf16, #tpu.memory_space<vmem>>, %arg4: memref<3x32x128xbf16, #tpu.memory_space<vmem>>, %arg5: memref<3x128x32xbf16, #tpu.memory_space<vmem>>, %arg6: memref<3x2x128xf32, #tpu.memory_space<vmem>>, %arg7: memref<3x6x32xf32, #tpu.memory_space<vmem>>, %arg8: memref<1x9x32xf32, #tpu.memory_space<vmem>>) attributes {dimension_semantics = [#tpu.dimension_semantics<parallel>], iteration_bounds = array<i64: 2>, scalar_prefetch = 0 : i64, scratch_operands = 0 : i64, tpu.core_type = #tpu.core_type<tc>, window_params = [{transform_indices = @transform_0, window_bounds = array<i64: 1, 16, 32>}, {pipeline_mode = #tpu.pipeline_mode<synchronous>, transform_indices = @transform_1, window_bounds = array<i64: 16, 32>}, {pipeline_mode = #tpu.pipeline_mode<synchronous>, transform_indices = @transform_2, window_bounds = array<i64: 3, 32, 128>}, {pipeline_mode = #tpu.pipeline_mode<synchronous>, transform_indices = @transform_3, window_bounds = array<i64: 3, 32, 128>}, {pipeline_mode = #tpu.pipeline_mode<synchronous>, transform_indices = @transform_4, window_bounds = array<i64: 3, 128, 32>}, {pipeline_mode = #tpu.pipeline_mode<synchronous>, transform_indices = @transform_5, window_bounds = array<i64: 3, 2, 128>}, {pipeline_mode = #tpu.pipeline_mode<synchronous>, transform_indices = @transform_6, window_bounds = array<i64: 3, 6, 32>}, {transform_indices = @transform_7, window_bounds = array<i64: 1, 9, 32>}]} {
    %c0 = arith.constant 0 : index
    %c0_0 = arith.constant 0 : index
    %c0_1 = arith.constant 0 : index
    %0 = vector.load %arg1[%c0, %c0_0, %c0_1] : memref<1x16x32xf32, #tpu.memory_space<vmem>>, vector<1x16x32xf32>
    %cst = arith.constant 5.65685415 : f32
    %1 = vector.broadcast %cst : f32 to vector<1x16x32xf32>
    %2 = arith.mulf %0, %1 : vector<1x16x32xf32>
    %c0_2 = arith.constant 0 : index
    %c0_3 = arith.constant 0 : index
    %3 = vector.load %arg2[%c0_2, %c0_3] : memref<16x32xf32, #tpu.memory_space<vmem>>, vector<16x32xf32>
    %4 = vector.shape_cast %3 : vector<16x32xf32> to vector<1x16x32xf32>
    %5 = arith.addf %2, %4 : vector<1x16x32xf32>
    %6 = vector.shape_cast %5 : vector<1x16x32xf32> to vector<16x32xf32>
    %7 = tpu.iota {dimensions = array<i32: 1>} : vector<16x16xi32>
    %c9_i32 = arith.constant 9 : i32
    %8 = vector.broadcast %c9_i32 : i32 to vector<16x16xi32>
    %9 = arith.cmpi sge, %7, %8 : vector<16x16xi32>
    %cst_4 = arith.constant -1.000000e+30 : f32
    %cst_5 = arith.constant 0.000000e+00 : f32
    %10 = vector.broadcast %cst_4 : f32 to vector<16x16xf32>
    %11 = vector.broadcast %cst_5 : f32 to vector<16x16xf32>
    %12 = arith.select %9, %10, %11 : vector<16x16xi1>, vector<16x16xf32>
    %c0_6 = arith.constant 0 : index
    %c0_7 = arith.constant 0 : index
    %c0_8 = arith.constant 0 : index
    %13 = vector.load %arg6[%c0_6, %c0_7, %c0_8] : memref<3x2x128xf32, #tpu.memory_space<vmem>>, vector<1x2x128xf32>
    %14 = vector.shape_cast %13 : vector<1x2x128xf32> to vector<2x128xf32>
    %c0_9 = arith.constant 0 : index
    %c0_10 = arith.constant 0 : index
    %c0_11 = arith.constant 0 : index
    %15 = vector.load %arg7[%c0_9, %c0_10, %c0_11] : memref<3x6x32xf32, #tpu.memory_space<vmem>>, vector<1x6x32xf32>
    %16 = vector.shape_cast %15 : vector<1x6x32xf32> to vector<6x32xf32>
    %17 = arith.truncf %6 : vector<16x32xf32> to vector<16x32xbf16>
    %c0_12 = arith.constant 0 : index
    %c0_13 = arith.constant 0 : index
    %c0_14 = arith.constant 0 : index
    %18 = vector.load %arg3[%c0_12, %c0_13, %c0_14] : memref<3x32x128xbf16, #tpu.memory_space<vmem>>, vector<1x32x128xbf16>
    %19 = vector.shape_cast %18 : vector<1x32x128xbf16> to vector<32x128xbf16>
    %cst_15 = arith.constant dense<0.000000e+00> : vector<16x128xf32>
    %20 = tpu.matmul %17, %19, %cst_15 {dimension_numbers = #tpu.dot_dimension_numbers<[1], [0], [0], [1], [0, 0, 1, 1], [], []>} : vector<16x32xbf16>, vector<32x128xbf16>, vector<16x128xf32> -> vector<16x128xf32>
    %21 = vector.extract_strided_slice %14 {offsets = [0, 0], sizes = [1, 128], strides = [1, 1]} : vector<2x128xf32> to vector<1x128xf32>
    %22 = vector.broadcast %21 : vector<1x128xf32> to vector<16x128xf32>
    %23 = arith.addf %20, %22 : vector<16x128xf32>
    %24 = vector.extract_strided_slice %23 {offsets = [0, 0], sizes = [16, 16], strides = [1, 1]} : vector<16x128xf32> to vector<16x16xf32>
    %25 = vector.shape_cast %24 : vector<16x16xf32> to vector<1x16x16xf32>
    %26 = vector.extract_strided_slice %23 {offsets = [0, 32], sizes = [16, 16], strides = [1, 1]} : vector<16x128xf32> to vector<16x16xf32>
    %27 = vector.shape_cast %26 : vector<16x16xf32> to vector<1x16x16xf32>
    %28 = vector.extract_strided_slice %23 {offsets = [0, 64], sizes = [16, 32], strides = [1, 1]} : vector<16x128xf32> to vector<16x32xf32>
    %29 = vector.shape_cast %28 : vector<16x32xf32> to vector<1x16x32xf32>
    %30 = arith.truncf %25 : vector<1x16x16xf32> to vector<1x16x16xbf16>
    %31 = arith.truncf %27 : vector<1x16x16xf32> to vector<1x16x16xbf16>
    "tpu.trace_start"() <{level = 10 : i32, message = "bld,bmd->blm"}> : () -> ()
    %cst_16 = arith.constant dense<0.000000e+00> : vector<1x16x16xf32>
    %32 = tpu.matmul %30, %31, %cst_16 {dimension_numbers = #tpu.dot_dimension_numbers<[2], [2], [1], [1], [0, 0, 0, 1, 1, 1], [0], [0]>} : vector<1x16x16xbf16>, vector<1x16x16xbf16>, vector<1x16x16xf32> -> vector<1x16x16xf32>
    "tpu.trace_stop"() : () -> ()
    %cst_17 = arith.constant 2.500000e-01 : f32
    %33 = vector.broadcast %cst_17 : f32 to vector<1x16x16xf32>
    %34 = arith.mulf %32, %33 : vector<1x16x16xf32>
    %35 = vector.shape_cast %12 : vector<16x16xf32> to vector<1x16x16xf32>
    %36 = arith.addf %34, %35 : vector<1x16x16xf32>
    %cst_18 = arith.constant dense<0xFF800000> : vector<1x16xf32>
    %37 = vector.multi_reduction <maximumf>, %36, %cst_18 [2] : vector<1x16x16xf32> to vector<1x16xf32>
    %38 = vector.shape_cast %37 : vector<1x16xf32> to vector<1x16x1xf32>
    %39 = vector.broadcast %38 : vector<1x16x1xf32> to vector<1x16x16xf32>
    %40 = arith.subf %36, %39 : vector<1x16x16xf32>
    %41 = math.exp %40 : vector<1x16x16xf32>
    %cst_19 = arith.constant dense<0.000000e+00> : vector<1x16xf32>
    %42 = vector.multi_reduction <add>, %41, %cst_19 [2] : vector<1x16x16xf32> to vector<1x16xf32>
    %43 = vector.shape_cast %42 : vector<1x16xf32> to vector<1x16x1xf32>
    %44 = tpu.reciprocal %43 {approx = true} : vector<1x16x1xf32> -> vector<1x16x1xf32>
    %45 = vector.broadcast %44 : vector<1x16x1xf32> to vector<1x16x16xf32>
    %46 = arith.mulf %41, %45 : vector<1x16x16xf32>
    %47 = arith.truncf %46 : vector<1x16x16xf32> to vector<1x16x16xbf16>
    %48 = arith.truncf %29 : vector<1x16x32xf32> to vector<1x16x32xbf16>
    "tpu.trace_start"() <{level = 10 : i32, message = "blm,bmd->bld"}> : () -> ()
    %cst_20 = arith.constant dense<0.000000e+00> : vector<1x16x32xf32>
    %49 = tpu.matmul %47, %48, %cst_20 {dimension_numbers = #tpu.dot_dimension_numbers<[2], [1], [1], [2], [0, 0, 0, 1, 1, 2], [0], [0]>} : vector<1x16x16xbf16>, vector<1x16x32xbf16>, vector<1x16x32xf32> -> vector<1x16x32xf32>
    "tpu.trace_stop"() : () -> ()
    %50 = vector.extract_strided_slice %23 {offsets = [0, 16], sizes = [16, 16], strides = [1, 1]} : vector<16x128xf32> to vector<16x16xf32>
    %51 = vector.shape_cast %50 : vector<16x16xf32> to vector<1x16x16xf32>
    %52 = vector.extract_strided_slice %23 {offsets = [0, 48], sizes = [16, 16], strides = [1, 1]} : vector<16x128xf32> to vector<16x16xf32>
    %53 = vector.shape_cast %52 : vector<16x16xf32> to vector<1x16x16xf32>
    %54 = vector.extract_strided_slice %23 {offsets = [0, 96], sizes = [16, 32], strides = [1, 1]} : vector<16x128xf32> to vector<16x32xf32>
    %55 = vector.shape_cast %54 : vector<16x32xf32> to vector<1x16x32xf32>
    %56 = arith.truncf %51 : vector<1x16x16xf32> to vector<1x16x16xbf16>
    %57 = arith.truncf %53 : vector<1x16x16xf32> to vector<1x16x16xbf16>
    "tpu.trace_start"() <{level = 10 : i32, message = "bld,bmd->blm"}> : () -> ()
    %cst_21 = arith.constant dense<0.000000e+00> : vector<1x16x16xf32>
    %58 = tpu.matmul %56, %57, %cst_21 {dimension_numbers = #tpu.dot_dimension_numbers<[2], [2], [1], [1], [0, 0, 0, 1, 1, 1], [0], [0]>} : vector<1x16x16xbf16>, vector<1x16x16xbf16>, vector<1x16x16xf32> -> vector<1x16x16xf32>
    "tpu.trace_stop"() : () -> ()
    %cst_22 = arith.constant 2.500000e-01 : f32
    %59 = vector.broadcast %cst_22 : f32 to vector<1x16x16xf32>
    %60 = arith.mulf %58, %59 : vector<1x16x16xf32>
    %61 = vector.shape_cast %12 : vector<16x16xf32> to vector<1x16x16xf32>
    %62 = arith.addf %60, %61 : vector<1x16x16xf32>
    %cst_23 = arith.constant dense<0xFF800000> : vector<1x16xf32>
    %63 = vector.multi_reduction <maximumf>, %62, %cst_23 [2] : vector<1x16x16xf32> to vector<1x16xf32>
    %64 = vector.shape_cast %63 : vector<1x16xf32> to vector<1x16x1xf32>
    %65 = vector.broadcast %64 : vector<1x16x1xf32> to vector<1x16x16xf32>
    %66 = arith.subf %62, %65 : vector<1x16x16xf32>
    %67 = math.exp %66 : vector<1x16x16xf32>
    %cst_24 = arith.constant dense<0.000000e+00> : vector<1x16xf32>
    %68 = vector.multi_reduction <add>, %67, %cst_24 [2] : vector<1x16x16xf32> to vector<1x16xf32>
    %69 = vector.shape_cast %68 : vector<1x16xf32> to vector<1x16x1xf32>
    %70 = tpu.reciprocal %69 {approx = true} : vector<1x16x1xf32> -> vector<1x16x1xf32>
    %71 = vector.broadcast %70 : vector<1x16x1xf32> to vector<1x16x16xf32>
    %72 = arith.mulf %67, %71 : vector<1x16x16xf32>
    %73 = arith.truncf %72 : vector<1x16x16xf32> to vector<1x16x16xbf16>
    %74 = arith.truncf %55 : vector<1x16x32xf32> to vector<1x16x32xbf16>
    "tpu.trace_start"() <{level = 10 : i32, message = "blm,bmd->bld"}> : () -> ()
    %cst_25 = arith.constant dense<0.000000e+00> : vector<1x16x32xf32>
    %75 = tpu.matmul %73, %74, %cst_25 {dimension_numbers = #tpu.dot_dimension_numbers<[2], [1], [1], [2], [0, 0, 0, 1, 1, 2], [0], [0]>} : vector<1x16x16xbf16>, vector<1x16x32xbf16>, vector<1x16x32xf32> -> vector<1x16x32xf32>
    "tpu.trace_stop"() : () -> ()
    %76 = arith.addf %49, %75 : vector<1x16x32xf32>
    %77 = vector.shape_cast %76 : vector<1x16x32xf32> to vector<16x32xf32>
    %78 = vector.extract_strided_slice %16 {offsets = [0, 0], sizes = [1, 32], strides = [1, 1]} : vector<6x32xf32> to vector<1x32xf32>
    %79 = vector.broadcast %78 : vector<1x32xf32> to vector<16x32xf32>
    %80 = arith.addf %77, %79 : vector<16x32xf32>
    %81 = arith.addf %6, %80 : vector<16x32xf32>
    %82 = vector.extract_strided_slice %16 {offsets = [1, 0], sizes = [1, 32], strides = [1, 1]} : vector<6x32xf32> to vector<1x32xf32>
    %83 = vector.extract_strided_slice %16 {offsets = [2, 0], sizes = [1, 32], strides = [1, 1]} : vector<6x32xf32> to vector<1x32xf32>
    %cst_26 = arith.constant dense<0.000000e+00> : vector<16xf32>
    %84 = vector.multi_reduction <add>, %81, %cst_26 [1] : vector<16x32xf32> to vector<16xf32>
    %85 = vector.shape_cast %84 : vector<16xf32> to vector<16x1xf32>
    %cst_27 = arith.constant 3.200000e+01 : f32
    %86 = vector.broadcast %cst_27 : f32 to vector<16x1xf32>
    %87 = arith.divf %85, %86 : vector<16x1xf32>
    %88 = vector.broadcast %87 : vector<16x1xf32> to vector<16x32xf32>
    %89 = arith.subf %81, %88 : vector<16x32xf32>
    %90 = arith.mulf %89, %89 : vector<16x32xf32>
    %cst_28 = arith.constant dense<0.000000e+00> : vector<16xf32>
    %91 = vector.multi_reduction <add>, %90, %cst_28 [1] : vector<16x32xf32> to vector<16xf32>
    %92 = vector.shape_cast %91 : vector<16xf32> to vector<16x1xf32>
    %cst_29 = arith.constant 3.200000e+01 : f32
    %93 = vector.broadcast %cst_29 : f32 to vector<16x1xf32>
    %94 = arith.divf %92, %93 : vector<16x1xf32>
    %95 = vector.broadcast %87 : vector<16x1xf32> to vector<16x32xf32>
    %96 = arith.subf %81, %95 : vector<16x32xf32>
    %cst_30 = arith.constant 9.99999974E-6 : f32
    %97 = vector.broadcast %cst_30 : f32 to vector<16x1xf32>
    %98 = arith.addf %94, %97 : vector<16x1xf32>
    %99 = math.rsqrt %98 : vector<16x1xf32>
    %100 = vector.broadcast %99 : vector<16x1xf32> to vector<16x32xf32>
    %101 = arith.mulf %96, %100 : vector<16x32xf32>
    %102 = vector.broadcast %82 : vector<1x32xf32> to vector<16x32xf32>
    %103 = arith.mulf %101, %102 : vector<16x32xf32>
    %104 = vector.broadcast %83 : vector<1x32xf32> to vector<16x32xf32>
    %105 = arith.addf %103, %104 : vector<16x32xf32>
    %106 = arith.truncf %105 : vector<16x32xf32> to vector<16x32xbf16>
    %c0_31 = arith.constant 0 : index
    %c0_32 = arith.constant 0 : index
    %c0_33 = arith.constant 0 : index
    %107 = vector.load %arg4[%c0_31, %c0_32, %c0_33] : memref<3x32x128xbf16, #tpu.memory_space<vmem>>, vector<1x32x128xbf16>
    %108 = vector.shape_cast %107 : vector<1x32x128xbf16> to vector<32x128xbf16>
    %cst_34 = arith.constant dense<0.000000e+00> : vector<16x128xf32>
    %109 = tpu.matmul %106, %108, %cst_34 {dimension_numbers = #tpu.dot_dimension_numbers<[1], [0], [0], [1], [0, 0, 1, 1], [], []>} : vector<16x32xbf16>, vector<32x128xbf16>, vector<16x128xf32> -> vector<16x128xf32>
    %110 = vector.extract_strided_slice %14 {offsets = [1, 0], sizes = [1, 128], strides = [1, 1]} : vector<2x128xf32> to vector<1x128xf32>
    %111 = vector.broadcast %110 : vector<1x128xf32> to vector<16x128xf32>
    %112 = arith.addf %109, %111 : vector<16x128xf32>
    %cst_35 = arith.constant 0.000000e+00 : f32
    %113 = vector.broadcast %cst_35 : f32 to vector<16x128xf32>
    %114 = arith.maximumf %112, %113 : vector<16x128xf32>
    %115 = arith.truncf %114 : vector<16x128xf32> to vector<16x128xbf16>
    %c0_36 = arith.constant 0 : index
    %c0_37 = arith.constant 0 : index
    %c0_38 = arith.constant 0 : index
    %116 = vector.load %arg5[%c0_36, %c0_37, %c0_38] : memref<3x128x32xbf16, #tpu.memory_space<vmem>>, vector<1x128x32xbf16>
    %117 = vector.shape_cast %116 : vector<1x128x32xbf16> to vector<128x32xbf16>
    %cst_39 = arith.constant dense<0.000000e+00> : vector<16x32xf32>
    %118 = tpu.matmul %115, %117, %cst_39 {dimension_numbers = #tpu.dot_dimension_numbers<[1], [0], [0], [1], [0, 0, 1, 1], [], []>} : vector<16x128xbf16>, vector<128x32xbf16>, vector<16x32xf32> -> vector<16x32xf32>
    %119 = vector.extract_strided_slice %16 {offsets = [5, 0], sizes = [1, 32], strides = [1, 1]} : vector<6x32xf32> to vector<1x32xf32>
    %120 = vector.broadcast %119 : vector<1x32xf32> to vector<16x32xf32>
    %121 = arith.addf %118, %120 : vector<16x32xf32>
    %122 = arith.addf %105, %121 : vector<16x32xf32>
    %123 = vector.extract_strided_slice %16 {offsets = [3, 0], sizes = [1, 32], strides = [1, 1]} : vector<6x32xf32> to vector<1x32xf32>
    %124 = vector.extract_strided_slice %16 {offsets = [4, 0], sizes = [1, 32], strides = [1, 1]} : vector<6x32xf32> to vector<1x32xf32>
    %cst_40 = arith.constant dense<0.000000e+00> : vector<16xf32>
    %125 = vector.multi_reduction <add>, %122, %cst_40 [1] : vector<16x32xf32> to vector<16xf32>
    %126 = vector.shape_cast %125 : vector<16xf32> to vector<16x1xf32>
    %cst_41 = arith.constant 3.200000e+01 : f32
    %127 = vector.broadcast %cst_41 : f32 to vector<16x1xf32>
    %128 = arith.divf %126, %127 : vector<16x1xf32>
    %129 = vector.broadcast %128 : vector<16x1xf32> to vector<16x32xf32>
    %130 = arith.subf %122, %129 : vector<16x32xf32>
    %131 = arith.mulf %130, %130 : vector<16x32xf32>
    %cst_42 = arith.constant dense<0.000000e+00> : vector<16xf32>
    %132 = vector.multi_reduction <add>, %131, %cst_42 [1] : vector<16x32xf32> to vector<16xf32>
    %133 = vector.shape_cast %132 : vector<16xf32> to vector<16x1xf32>
    %cst_43 = arith.constant 3.200000e+01 : f32
    %134 = vector.broadcast %cst_43 : f32 to vector<16x1xf32>
    %135 = arith.divf %133, %134 : vector<16x1xf32>
    %136 = vector.broadcast %128 : vector<16x1xf32> to vector<16x32xf32>
    %137 = arith.subf %122, %136 : vector<16x32xf32>
    %cst_44 = arith.constant 9.99999974E-6 : f32
    %138 = vector.broadcast %cst_44 : f32 to vector<16x1xf32>
    %139 = arith.addf %135, %138 : vector<16x1xf32>
    %140 = math.rsqrt %139 : vector<16x1xf32>
    %141 = vector.broadcast %140 : vector<16x1xf32> to vector<16x32xf32>
    %142 = arith.mulf %137, %141 : vector<16x32xf32>
    %143 = vector.broadcast %123 : vector<1x32xf32> to vector<16x32xf32>
    %144 = arith.mulf %142, %143 : vector<16x32xf32>
    %145 = vector.broadcast %124 : vector<1x32xf32> to vector<16x32xf32>
    %146 = arith.addf %144, %145 : vector<16x32xf32>
    %c1 = arith.constant 1 : index
    %c0_45 = arith.constant 0 : index
    %c0_46 = arith.constant 0 : index
    %147 = vector.load %arg6[%c1, %c0_45, %c0_46] : memref<3x2x128xf32, #tpu.memory_space<vmem>>, vector<1x2x128xf32>
    %148 = vector.shape_cast %147 : vector<1x2x128xf32> to vector<2x128xf32>
    %c1_47 = arith.constant 1 : index
    %c0_48 = arith.constant 0 : index
    %c0_49 = arith.constant 0 : index
    %149 = vector.load %arg7[%c1_47, %c0_48, %c0_49] : memref<3x6x32xf32, #tpu.memory_space<vmem>>, vector<1x6x32xf32>
    %150 = vector.shape_cast %149 : vector<1x6x32xf32> to vector<6x32xf32>
    %151 = arith.truncf %146 : vector<16x32xf32> to vector<16x32xbf16>
    %c1_50 = arith.constant 1 : index
    %c0_51 = arith.constant 0 : index
    %c0_52 = arith.constant 0 : index
    %152 = vector.load %arg3[%c1_50, %c0_51, %c0_52] : memref<3x32x128xbf16, #tpu.memory_space<vmem>>, vector<1x32x128xbf16>
    %153 = vector.shape_cast %152 : vector<1x32x128xbf16> to vector<32x128xbf16>
    %cst_53 = arith.constant dense<0.000000e+00> : vector<16x128xf32>
    %154 = tpu.matmul %151, %153, %cst_53 {dimension_numbers = #tpu.dot_dimension_numbers<[1], [0], [0], [1], [0, 0, 1, 1], [], []>} : vector<16x32xbf16>, vector<32x128xbf16>, vector<16x128xf32> -> vector<16x128xf32>
    %155 = vector.extract_strided_slice %148 {offsets = [0, 0], sizes = [1, 128], strides = [1, 1]} : vector<2x128xf32> to vector<1x128xf32>
    %156 = vector.broadcast %155 : vector<1x128xf32> to vector<16x128xf32>
    %157 = arith.addf %154, %156 : vector<16x128xf32>
    %158 = vector.extract_strided_slice %157 {offsets = [0, 0], sizes = [16, 16], strides = [1, 1]} : vector<16x128xf32> to vector<16x16xf32>
    %159 = vector.shape_cast %158 : vector<16x16xf32> to vector<1x16x16xf32>
    %160 = vector.extract_strided_slice %157 {offsets = [0, 32], sizes = [16, 16], strides = [1, 1]} : vector<16x128xf32> to vector<16x16xf32>
    %161 = vector.shape_cast %160 : vector<16x16xf32> to vector<1x16x16xf32>
    %162 = vector.extract_strided_slice %157 {offsets = [0, 64], sizes = [16, 32], strides = [1, 1]} : vector<16x128xf32> to vector<16x32xf32>
    %163 = vector.shape_cast %162 : vector<16x32xf32> to vector<1x16x32xf32>
    %164 = arith.truncf %159 : vector<1x16x16xf32> to vector<1x16x16xbf16>
    %165 = arith.truncf %161 : vector<1x16x16xf32> to vector<1x16x16xbf16>
    "tpu.trace_start"() <{level = 10 : i32, message = "bld,bmd->blm"}> : () -> ()
    %cst_54 = arith.constant dense<0.000000e+00> : vector<1x16x16xf32>
    %166 = tpu.matmul %164, %165, %cst_54 {dimension_numbers = #tpu.dot_dimension_numbers<[2], [2], [1], [1], [0, 0, 0, 1, 1, 1], [0], [0]>} : vector<1x16x16xbf16>, vector<1x16x16xbf16>, vector<1x16x16xf32> -> vector<1x16x16xf32>
    "tpu.trace_stop"() : () -> ()
    %cst_55 = arith.constant 2.500000e-01 : f32
    %167 = vector.broadcast %cst_55 : f32 to vector<1x16x16xf32>
    %168 = arith.mulf %166, %167 : vector<1x16x16xf32>
    %169 = vector.shape_cast %12 : vector<16x16xf32> to vector<1x16x16xf32>
    %170 = arith.addf %168, %169 : vector<1x16x16xf32>
    %cst_56 = arith.constant dense<0xFF800000> : vector<1x16xf32>
    %171 = vector.multi_reduction <maximumf>, %170, %cst_56 [2] : vector<1x16x16xf32> to vector<1x16xf32>
    %172 = vector.shape_cast %171 : vector<1x16xf32> to vector<1x16x1xf32>
    %173 = vector.broadcast %172 : vector<1x16x1xf32> to vector<1x16x16xf32>
    %174 = arith.subf %170, %173 : vector<1x16x16xf32>
    %175 = math.exp %174 : vector<1x16x16xf32>
    %cst_57 = arith.constant dense<0.000000e+00> : vector<1x16xf32>
    %176 = vector.multi_reduction <add>, %175, %cst_57 [2] : vector<1x16x16xf32> to vector<1x16xf32>
    %177 = vector.shape_cast %176 : vector<1x16xf32> to vector<1x16x1xf32>
    %178 = tpu.reciprocal %177 {approx = true} : vector<1x16x1xf32> -> vector<1x16x1xf32>
    %179 = vector.broadcast %178 : vector<1x16x1xf32> to vector<1x16x16xf32>
    %180 = arith.mulf %175, %179 : vector<1x16x16xf32>
    %181 = arith.truncf %180 : vector<1x16x16xf32> to vector<1x16x16xbf16>
    %182 = arith.truncf %163 : vector<1x16x32xf32> to vector<1x16x32xbf16>
    "tpu.trace_start"() <{level = 10 : i32, message = "blm,bmd->bld"}> : () -> ()
    %cst_58 = arith.constant dense<0.000000e+00> : vector<1x16x32xf32>
    %183 = tpu.matmul %181, %182, %cst_58 {dimension_numbers = #tpu.dot_dimension_numbers<[2], [1], [1], [2], [0, 0, 0, 1, 1, 2], [0], [0]>} : vector<1x16x16xbf16>, vector<1x16x32xbf16>, vector<1x16x32xf32> -> vector<1x16x32xf32>
    "tpu.trace_stop"() : () -> ()
    %184 = vector.extract_strided_slice %157 {offsets = [0, 16], sizes = [16, 16], strides = [1, 1]} : vector<16x128xf32> to vector<16x16xf32>
    %185 = vector.shape_cast %184 : vector<16x16xf32> to vector<1x16x16xf32>
    %186 = vector.extract_strided_slice %157 {offsets = [0, 48], sizes = [16, 16], strides = [1, 1]} : vector<16x128xf32> to vector<16x16xf32>
    %187 = vector.shape_cast %186 : vector<16x16xf32> to vector<1x16x16xf32>
    %188 = vector.extract_strided_slice %157 {offsets = [0, 96], sizes = [16, 32], strides = [1, 1]} : vector<16x128xf32> to vector<16x32xf32>
    %189 = vector.shape_cast %188 : vector<16x32xf32> to vector<1x16x32xf32>
    %190 = arith.truncf %185 : vector<1x16x16xf32> to vector<1x16x16xbf16>
    %191 = arith.truncf %187 : vector<1x16x16xf32> to vector<1x16x16xbf16>
    "tpu.trace_start"() <{level = 10 : i32, message = "bld,bmd->blm"}> : () -> ()
    %cst_59 = arith.constant dense<0.000000e+00> : vector<1x16x16xf32>
    %192 = tpu.matmul %190, %191, %cst_59 {dimension_numbers = #tpu.dot_dimension_numbers<[2], [2], [1], [1], [0, 0, 0, 1, 1, 1], [0], [0]>} : vector<1x16x16xbf16>, vector<1x16x16xbf16>, vector<1x16x16xf32> -> vector<1x16x16xf32>
    "tpu.trace_stop"() : () -> ()
    %cst_60 = arith.constant 2.500000e-01 : f32
    %193 = vector.broadcast %cst_60 : f32 to vector<1x16x16xf32>
    %194 = arith.mulf %192, %193 : vector<1x16x16xf32>
    %195 = vector.shape_cast %12 : vector<16x16xf32> to vector<1x16x16xf32>
    %196 = arith.addf %194, %195 : vector<1x16x16xf32>
    %cst_61 = arith.constant dense<0xFF800000> : vector<1x16xf32>
    %197 = vector.multi_reduction <maximumf>, %196, %cst_61 [2] : vector<1x16x16xf32> to vector<1x16xf32>
    %198 = vector.shape_cast %197 : vector<1x16xf32> to vector<1x16x1xf32>
    %199 = vector.broadcast %198 : vector<1x16x1xf32> to vector<1x16x16xf32>
    %200 = arith.subf %196, %199 : vector<1x16x16xf32>
    %201 = math.exp %200 : vector<1x16x16xf32>
    %cst_62 = arith.constant dense<0.000000e+00> : vector<1x16xf32>
    %202 = vector.multi_reduction <add>, %201, %cst_62 [2] : vector<1x16x16xf32> to vector<1x16xf32>
    %203 = vector.shape_cast %202 : vector<1x16xf32> to vector<1x16x1xf32>
    %204 = tpu.reciprocal %203 {approx = true} : vector<1x16x1xf32> -> vector<1x16x1xf32>
    %205 = vector.broadcast %204 : vector<1x16x1xf32> to vector<1x16x16xf32>
    %206 = arith.mulf %201, %205 : vector<1x16x16xf32>
    %207 = arith.truncf %206 : vector<1x16x16xf32> to vector<1x16x16xbf16>
    %208 = arith.truncf %189 : vector<1x16x32xf32> to vector<1x16x32xbf16>
    "tpu.trace_start"() <{level = 10 : i32, message = "blm,bmd->bld"}> : () -> ()
    %cst_63 = arith.constant dense<0.000000e+00> : vector<1x16x32xf32>
    %209 = tpu.matmul %207, %208, %cst_63 {dimension_numbers = #tpu.dot_dimension_numbers<[2], [1], [1], [2], [0, 0, 0, 1, 1, 2], [0], [0]>} : vector<1x16x16xbf16>, vector<1x16x32xbf16>, vector<1x16x32xf32> -> vector<1x16x32xf32>
    "tpu.trace_stop"() : () -> ()
    %210 = arith.addf %183, %209 : vector<1x16x32xf32>
    %211 = vector.shape_cast %210 : vector<1x16x32xf32> to vector<16x32xf32>
    %212 = vector.extract_strided_slice %150 {offsets = [0, 0], sizes = [1, 32], strides = [1, 1]} : vector<6x32xf32> to vector<1x32xf32>
    %213 = vector.broadcast %212 : vector<1x32xf32> to vector<16x32xf32>
    %214 = arith.addf %211, %213 : vector<16x32xf32>
    %215 = arith.addf %146, %214 : vector<16x32xf32>
    %216 = vector.extract_strided_slice %150 {offsets = [1, 0], sizes = [1, 32], strides = [1, 1]} : vector<6x32xf32> to vector<1x32xf32>
    %217 = vector.extract_strided_slice %150 {offsets = [2, 0], sizes = [1, 32], strides = [1, 1]} : vector<6x32xf32> to vector<1x32xf32>
    %cst_64 = arith.constant dense<0.000000e+00> : vector<16xf32>
    %218 = vector.multi_reduction <add>, %215, %cst_64 [1] : vector<16x32xf32> to vector<16xf32>
    %219 = vector.shape_cast %218 : vector<16xf32> to vector<16x1xf32>
    %cst_65 = arith.constant 3.200000e+01 : f32
    %220 = vector.broadcast %cst_65 : f32 to vector<16x1xf32>
    %221 = arith.divf %219, %220 : vector<16x1xf32>
    %222 = vector.broadcast %221 : vector<16x1xf32> to vector<16x32xf32>
    %223 = arith.subf %215, %222 : vector<16x32xf32>
    %224 = arith.mulf %223, %223 : vector<16x32xf32>
    %cst_66 = arith.constant dense<0.000000e+00> : vector<16xf32>
    %225 = vector.multi_reduction <add>, %224, %cst_66 [1] : vector<16x32xf32> to vector<16xf32>
    %226 = vector.shape_cast %225 : vector<16xf32> to vector<16x1xf32>
    %cst_67 = arith.constant 3.200000e+01 : f32
    %227 = vector.broadcast %cst_67 : f32 to vector<16x1xf32>
    %228 = arith.divf %226, %227 : vector<16x1xf32>
    %229 = vector.broadcast %221 : vector<16x1xf32> to vector<16x32xf32>
    %230 = arith.subf %215, %229 : vector<16x32xf32>
    %cst_68 = arith.constant 9.99999974E-6 : f32
    %231 = vector.broadcast %cst_68 : f32 to vector<16x1xf32>
    %232 = arith.addf %228, %231 : vector<16x1xf32>
    %233 = math.rsqrt %232 : vector<16x1xf32>
    %234 = vector.broadcast %233 : vector<16x1xf32> to vector<16x32xf32>
    %235 = arith.mulf %230, %234 : vector<16x32xf32>
    %236 = vector.broadcast %216 : vector<1x32xf32> to vector<16x32xf32>
    %237 = arith.mulf %235, %236 : vector<16x32xf32>
    %238 = vector.broadcast %217 : vector<1x32xf32> to vector<16x32xf32>
    %239 = arith.addf %237, %238 : vector<16x32xf32>
    %240 = arith.truncf %239 : vector<16x32xf32> to vector<16x32xbf16>
    %c1_69 = arith.constant 1 : index
    %c0_70 = arith.constant 0 : index
    %c0_71 = arith.constant 0 : index
    %241 = vector.load %arg4[%c1_69, %c0_70, %c0_71] : memref<3x32x128xbf16, #tpu.memory_space<vmem>>, vector<1x32x128xbf16>
    %242 = vector.shape_cast %241 : vector<1x32x128xbf16> to vector<32x128xbf16>
    %cst_72 = arith.constant dense<0.000000e+00> : vector<16x128xf32>
    %243 = tpu.matmul %240, %242, %cst_72 {dimension_numbers = #tpu.dot_dimension_numbers<[1], [0], [0], [1], [0, 0, 1, 1], [], []>} : vector<16x32xbf16>, vector<32x128xbf16>, vector<16x128xf32> -> vector<16x128xf32>
    %244 = vector.extract_strided_slice %148 {offsets = [1, 0], sizes = [1, 128], strides = [1, 1]} : vector<2x128xf32> to vector<1x128xf32>
    %245 = vector.broadcast %244 : vector<1x128xf32> to vector<16x128xf32>
    %246 = arith.addf %243, %245 : vector<16x128xf32>
    %cst_73 = arith.constant 0.000000e+00 : f32
    %247 = vector.broadcast %cst_73 : f32 to vector<16x128xf32>
    %248 = arith.maximumf %246, %247 : vector<16x128xf32>
    %249 = arith.truncf %248 : vector<16x128xf32> to vector<16x128xbf16>
    %c1_74 = arith.constant 1 : index
    %c0_75 = arith.constant 0 : index
    %c0_76 = arith.constant 0 : index
    %250 = vector.load %arg5[%c1_74, %c0_75, %c0_76] : memref<3x128x32xbf16, #tpu.memory_space<vmem>>, vector<1x128x32xbf16>
    %251 = vector.shape_cast %250 : vector<1x128x32xbf16> to vector<128x32xbf16>
    %cst_77 = arith.constant dense<0.000000e+00> : vector<16x32xf32>
    %252 = tpu.matmul %249, %251, %cst_77 {dimension_numbers = #tpu.dot_dimension_numbers<[1], [0], [0], [1], [0, 0, 1, 1], [], []>} : vector<16x128xbf16>, vector<128x32xbf16>, vector<16x32xf32> -> vector<16x32xf32>
    %253 = vector.extract_strided_slice %150 {offsets = [5, 0], sizes = [1, 32], strides = [1, 1]} : vector<6x32xf32> to vector<1x32xf32>
    %254 = vector.broadcast %253 : vector<1x32xf32> to vector<16x32xf32>
    %255 = arith.addf %252, %254 : vector<16x32xf32>
    %256 = arith.addf %239, %255 : vector<16x32xf32>
    %257 = vector.extract_strided_slice %150 {offsets = [3, 0], sizes = [1, 32], strides = [1, 1]} : vector<6x32xf32> to vector<1x32xf32>
    %258 = vector.extract_strided_slice %150 {offsets = [4, 0], sizes = [1, 32], strides = [1, 1]} : vector<6x32xf32> to vector<1x32xf32>
    %cst_78 = arith.constant dense<0.000000e+00> : vector<16xf32>
    %259 = vector.multi_reduction <add>, %256, %cst_78 [1] : vector<16x32xf32> to vector<16xf32>
    %260 = vector.shape_cast %259 : vector<16xf32> to vector<16x1xf32>
    %cst_79 = arith.constant 3.200000e+01 : f32
    %261 = vector.broadcast %cst_79 : f32 to vector<16x1xf32>
    %262 = arith.divf %260, %261 : vector<16x1xf32>
    %263 = vector.broadcast %262 : vector<16x1xf32> to vector<16x32xf32>
    %264 = arith.subf %256, %263 : vector<16x32xf32>
    %265 = arith.mulf %264, %264 : vector<16x32xf32>
    %cst_80 = arith.constant dense<0.000000e+00> : vector<16xf32>
    %266 = vector.multi_reduction <add>, %265, %cst_80 [1] : vector<16x32xf32> to vector<16xf32>
    %267 = vector.shape_cast %266 : vector<16xf32> to vector<16x1xf32>
    %cst_81 = arith.constant 3.200000e+01 : f32
    %268 = vector.broadcast %cst_81 : f32 to vector<16x1xf32>
    %269 = arith.divf %267, %268 : vector<16x1xf32>
    %270 = vector.broadcast %262 : vector<16x1xf32> to vector<16x32xf32>
    %271 = arith.subf %256, %270 : vector<16x32xf32>
    %cst_82 = arith.constant 9.99999974E-6 : f32
    %272 = vector.broadcast %cst_82 : f32 to vector<16x1xf32>
    %273 = arith.addf %269, %272 : vector<16x1xf32>
    %274 = math.rsqrt %273 : vector<16x1xf32>
    %275 = vector.broadcast %274 : vector<16x1xf32> to vector<16x32xf32>
    %276 = arith.mulf %271, %275 : vector<16x32xf32>
    %277 = vector.broadcast %257 : vector<1x32xf32> to vector<16x32xf32>
    %278 = arith.mulf %276, %277 : vector<16x32xf32>
    %279 = vector.broadcast %258 : vector<1x32xf32> to vector<16x32xf32>
    %280 = arith.addf %278, %279 : vector<16x32xf32>
    %c2 = arith.constant 2 : index
    %c0_83 = arith.constant 0 : index
    %c0_84 = arith.constant 0 : index
    %281 = vector.load %arg6[%c2, %c0_83, %c0_84] : memref<3x2x128xf32, #tpu.memory_space<vmem>>, vector<1x2x128xf32>
    %282 = vector.shape_cast %281 : vector<1x2x128xf32> to vector<2x128xf32>
    %c2_85 = arith.constant 2 : index
    %c0_86 = arith.constant 0 : index
    %c0_87 = arith.constant 0 : index
    %283 = vector.load %arg7[%c2_85, %c0_86, %c0_87] : memref<3x6x32xf32, #tpu.memory_space<vmem>>, vector<1x6x32xf32>
    %284 = vector.shape_cast %283 : vector<1x6x32xf32> to vector<6x32xf32>
    %285 = arith.truncf %280 : vector<16x32xf32> to vector<16x32xbf16>
    %c2_88 = arith.constant 2 : index
    %c0_89 = arith.constant 0 : index
    %c0_90 = arith.constant 0 : index
    %286 = vector.load %arg3[%c2_88, %c0_89, %c0_90] : memref<3x32x128xbf16, #tpu.memory_space<vmem>>, vector<1x32x128xbf16>
    %287 = vector.shape_cast %286 : vector<1x32x128xbf16> to vector<32x128xbf16>
    %cst_91 = arith.constant dense<0.000000e+00> : vector<16x128xf32>
    %288 = tpu.matmul %285, %287, %cst_91 {dimension_numbers = #tpu.dot_dimension_numbers<[1], [0], [0], [1], [0, 0, 1, 1], [], []>} : vector<16x32xbf16>, vector<32x128xbf16>, vector<16x128xf32> -> vector<16x128xf32>
    %289 = vector.extract_strided_slice %282 {offsets = [0, 0], sizes = [1, 128], strides = [1, 1]} : vector<2x128xf32> to vector<1x128xf32>
    %290 = vector.broadcast %289 : vector<1x128xf32> to vector<16x128xf32>
    %291 = arith.addf %288, %290 : vector<16x128xf32>
    %292 = vector.extract_strided_slice %291 {offsets = [0, 0], sizes = [16, 16], strides = [1, 1]} : vector<16x128xf32> to vector<16x16xf32>
    %293 = vector.shape_cast %292 : vector<16x16xf32> to vector<1x16x16xf32>
    %294 = vector.extract_strided_slice %291 {offsets = [0, 32], sizes = [16, 16], strides = [1, 1]} : vector<16x128xf32> to vector<16x16xf32>
    %295 = vector.shape_cast %294 : vector<16x16xf32> to vector<1x16x16xf32>
    %296 = vector.extract_strided_slice %291 {offsets = [0, 64], sizes = [16, 32], strides = [1, 1]} : vector<16x128xf32> to vector<16x32xf32>
    %297 = vector.shape_cast %296 : vector<16x32xf32> to vector<1x16x32xf32>
    %298 = arith.truncf %293 : vector<1x16x16xf32> to vector<1x16x16xbf16>
    %299 = arith.truncf %295 : vector<1x16x16xf32> to vector<1x16x16xbf16>
    "tpu.trace_start"() <{level = 10 : i32, message = "bld,bmd->blm"}> : () -> ()
    %cst_92 = arith.constant dense<0.000000e+00> : vector<1x16x16xf32>
    %300 = tpu.matmul %298, %299, %cst_92 {dimension_numbers = #tpu.dot_dimension_numbers<[2], [2], [1], [1], [0, 0, 0, 1, 1, 1], [0], [0]>} : vector<1x16x16xbf16>, vector<1x16x16xbf16>, vector<1x16x16xf32> -> vector<1x16x16xf32>
    "tpu.trace_stop"() : () -> ()
    %cst_93 = arith.constant 2.500000e-01 : f32
    %301 = vector.broadcast %cst_93 : f32 to vector<1x16x16xf32>
    %302 = arith.mulf %300, %301 : vector<1x16x16xf32>
    %303 = vector.shape_cast %12 : vector<16x16xf32> to vector<1x16x16xf32>
    %304 = arith.addf %302, %303 : vector<1x16x16xf32>
    %cst_94 = arith.constant dense<0xFF800000> : vector<1x16xf32>
    %305 = vector.multi_reduction <maximumf>, %304, %cst_94 [2] : vector<1x16x16xf32> to vector<1x16xf32>
    %306 = vector.shape_cast %305 : vector<1x16xf32> to vector<1x16x1xf32>
    %307 = vector.broadcast %306 : vector<1x16x1xf32> to vector<1x16x16xf32>
    %308 = arith.subf %304, %307 : vector<1x16x16xf32>
    %309 = math.exp %308 : vector<1x16x16xf32>
    %cst_95 = arith.constant dense<0.000000e+00> : vector<1x16xf32>
    %310 = vector.multi_reduction <add>, %309, %cst_95 [2] : vector<1x16x16xf32> to vector<1x16xf32>
    %311 = vector.shape_cast %310 : vector<1x16xf32> to vector<1x16x1xf32>
    %312 = tpu.reciprocal %311 {approx = true} : vector<1x16x1xf32> -> vector<1x16x1xf32>
    %313 = vector.broadcast %312 : vector<1x16x1xf32> to vector<1x16x16xf32>
    %314 = arith.mulf %309, %313 : vector<1x16x16xf32>
    %315 = arith.truncf %314 : vector<1x16x16xf32> to vector<1x16x16xbf16>
    %316 = arith.truncf %297 : vector<1x16x32xf32> to vector<1x16x32xbf16>
    "tpu.trace_start"() <{level = 10 : i32, message = "blm,bmd->bld"}> : () -> ()
    %cst_96 = arith.constant dense<0.000000e+00> : vector<1x16x32xf32>
    %317 = tpu.matmul %315, %316, %cst_96 {dimension_numbers = #tpu.dot_dimension_numbers<[2], [1], [1], [2], [0, 0, 0, 1, 1, 2], [0], [0]>} : vector<1x16x16xbf16>, vector<1x16x32xbf16>, vector<1x16x32xf32> -> vector<1x16x32xf32>
    "tpu.trace_stop"() : () -> ()
    %318 = vector.extract_strided_slice %291 {offsets = [0, 16], sizes = [16, 16], strides = [1, 1]} : vector<16x128xf32> to vector<16x16xf32>
    %319 = vector.shape_cast %318 : vector<16x16xf32> to vector<1x16x16xf32>
    %320 = vector.extract_strided_slice %291 {offsets = [0, 48], sizes = [16, 16], strides = [1, 1]} : vector<16x128xf32> to vector<16x16xf32>
    %321 = vector.shape_cast %320 : vector<16x16xf32> to vector<1x16x16xf32>
    %322 = vector.extract_strided_slice %291 {offsets = [0, 96], sizes = [16, 32], strides = [1, 1]} : vector<16x128xf32> to vector<16x32xf32>
    %323 = vector.shape_cast %322 : vector<16x32xf32> to vector<1x16x32xf32>
    %324 = arith.truncf %319 : vector<1x16x16xf32> to vector<1x16x16xbf16>
    %325 = arith.truncf %321 : vector<1x16x16xf32> to vector<1x16x16xbf16>
    "tpu.trace_start"() <{level = 10 : i32, message = "bld,bmd->blm"}> : () -> ()
    %cst_97 = arith.constant dense<0.000000e+00> : vector<1x16x16xf32>
    %326 = tpu.matmul %324, %325, %cst_97 {dimension_numbers = #tpu.dot_dimension_numbers<[2], [2], [1], [1], [0, 0, 0, 1, 1, 1], [0], [0]>} : vector<1x16x16xbf16>, vector<1x16x16xbf16>, vector<1x16x16xf32> -> vector<1x16x16xf32>
    "tpu.trace_stop"() : () -> ()
    %cst_98 = arith.constant 2.500000e-01 : f32
    %327 = vector.broadcast %cst_98 : f32 to vector<1x16x16xf32>
    %328 = arith.mulf %326, %327 : vector<1x16x16xf32>
    %329 = vector.shape_cast %12 : vector<16x16xf32> to vector<1x16x16xf32>
    %330 = arith.addf %328, %329 : vector<1x16x16xf32>
    %cst_99 = arith.constant dense<0xFF800000> : vector<1x16xf32>
    %331 = vector.multi_reduction <maximumf>, %330, %cst_99 [2] : vector<1x16x16xf32> to vector<1x16xf32>
    %332 = vector.shape_cast %331 : vector<1x16xf32> to vector<1x16x1xf32>
    %333 = vector.broadcast %332 : vector<1x16x1xf32> to vector<1x16x16xf32>
    %334 = arith.subf %330, %333 : vector<1x16x16xf32>
    %335 = math.exp %334 : vector<1x16x16xf32>
    %cst_100 = arith.constant dense<0.000000e+00> : vector<1x16xf32>
    %336 = vector.multi_reduction <add>, %335, %cst_100 [2] : vector<1x16x16xf32> to vector<1x16xf32>
    %337 = vector.shape_cast %336 : vector<1x16xf32> to vector<1x16x1xf32>
    %338 = tpu.reciprocal %337 {approx = true} : vector<1x16x1xf32> -> vector<1x16x1xf32>
    %339 = vector.broadcast %338 : vector<1x16x1xf32> to vector<1x16x16xf32>
    %340 = arith.mulf %335, %339 : vector<1x16x16xf32>
    %341 = arith.truncf %340 : vector<1x16x16xf32> to vector<1x16x16xbf16>
    %342 = arith.truncf %323 : vector<1x16x32xf32> to vector<1x16x32xbf16>
    "tpu.trace_start"() <{level = 10 : i32, message = "blm,bmd->bld"}> : () -> ()
    %cst_101 = arith.constant dense<0.000000e+00> : vector<1x16x32xf32>
    %343 = tpu.matmul %341, %342, %cst_101 {dimension_numbers = #tpu.dot_dimension_numbers<[2], [1], [1], [2], [0, 0, 0, 1, 1, 2], [0], [0]>} : vector<1x16x16xbf16>, vector<1x16x32xbf16>, vector<1x16x32xf32> -> vector<1x16x32xf32>
    "tpu.trace_stop"() : () -> ()
    %344 = arith.addf %317, %343 : vector<1x16x32xf32>
    %345 = vector.shape_cast %344 : vector<1x16x32xf32> to vector<16x32xf32>
    %346 = vector.extract_strided_slice %284 {offsets = [0, 0], sizes = [1, 32], strides = [1, 1]} : vector<6x32xf32> to vector<1x32xf32>
    %347 = vector.broadcast %346 : vector<1x32xf32> to vector<16x32xf32>
    %348 = arith.addf %345, %347 : vector<16x32xf32>
    %349 = arith.addf %280, %348 : vector<16x32xf32>
    %350 = vector.extract_strided_slice %284 {offsets = [1, 0], sizes = [1, 32], strides = [1, 1]} : vector<6x32xf32> to vector<1x32xf32>
    %351 = vector.extract_strided_slice %284 {offsets = [2, 0], sizes = [1, 32], strides = [1, 1]} : vector<6x32xf32> to vector<1x32xf32>
    %cst_102 = arith.constant dense<0.000000e+00> : vector<16xf32>
    %352 = vector.multi_reduction <add>, %349, %cst_102 [1] : vector<16x32xf32> to vector<16xf32>
    %353 = vector.shape_cast %352 : vector<16xf32> to vector<16x1xf32>
    %cst_103 = arith.constant 3.200000e+01 : f32
    %354 = vector.broadcast %cst_103 : f32 to vector<16x1xf32>
    %355 = arith.divf %353, %354 : vector<16x1xf32>
    %356 = vector.broadcast %355 : vector<16x1xf32> to vector<16x32xf32>
    %357 = arith.subf %349, %356 : vector<16x32xf32>
    %358 = arith.mulf %357, %357 : vector<16x32xf32>
    %cst_104 = arith.constant dense<0.000000e+00> : vector<16xf32>
    %359 = vector.multi_reduction <add>, %358, %cst_104 [1] : vector<16x32xf32> to vector<16xf32>
    %360 = vector.shape_cast %359 : vector<16xf32> to vector<16x1xf32>
    %cst_105 = arith.constant 3.200000e+01 : f32
    %361 = vector.broadcast %cst_105 : f32 to vector<16x1xf32>
    %362 = arith.divf %360, %361 : vector<16x1xf32>
    %363 = vector.broadcast %355 : vector<16x1xf32> to vector<16x32xf32>
    %364 = arith.subf %349, %363 : vector<16x32xf32>
    %cst_106 = arith.constant 9.99999974E-6 : f32
    %365 = vector.broadcast %cst_106 : f32 to vector<16x1xf32>
    %366 = arith.addf %362, %365 : vector<16x1xf32>
    %367 = math.rsqrt %366 : vector<16x1xf32>
    %368 = vector.broadcast %367 : vector<16x1xf32> to vector<16x32xf32>
    %369 = arith.mulf %364, %368 : vector<16x32xf32>
    %370 = vector.broadcast %350 : vector<1x32xf32> to vector<16x32xf32>
    %371 = arith.mulf %369, %370 : vector<16x32xf32>
    %372 = vector.broadcast %351 : vector<1x32xf32> to vector<16x32xf32>
    %373 = arith.addf %371, %372 : vector<16x32xf32>
    %374 = arith.truncf %373 : vector<16x32xf32> to vector<16x32xbf16>
    %c2_107 = arith.constant 2 : index
    %c0_108 = arith.constant 0 : index
    %c0_109 = arith.constant 0 : index
    %375 = vector.load %arg4[%c2_107, %c0_108, %c0_109] : memref<3x32x128xbf16, #tpu.memory_space<vmem>>, vector<1x32x128xbf16>
    %376 = vector.shape_cast %375 : vector<1x32x128xbf16> to vector<32x128xbf16>
    %cst_110 = arith.constant dense<0.000000e+00> : vector<16x128xf32>
    %377 = tpu.matmul %374, %376, %cst_110 {dimension_numbers = #tpu.dot_dimension_numbers<[1], [0], [0], [1], [0, 0, 1, 1], [], []>} : vector<16x32xbf16>, vector<32x128xbf16>, vector<16x128xf32> -> vector<16x128xf32>
    %378 = vector.extract_strided_slice %282 {offsets = [1, 0], sizes = [1, 128], strides = [1, 1]} : vector<2x128xf32> to vector<1x128xf32>
    %379 = vector.broadcast %378 : vector<1x128xf32> to vector<16x128xf32>
    %380 = arith.addf %377, %379 : vector<16x128xf32>
    %cst_111 = arith.constant 0.000000e+00 : f32
    %381 = vector.broadcast %cst_111 : f32 to vector<16x128xf32>
    %382 = arith.maximumf %380, %381 : vector<16x128xf32>
    %383 = arith.truncf %382 : vector<16x128xf32> to vector<16x128xbf16>
    %c2_112 = arith.constant 2 : index
    %c0_113 = arith.constant 0 : index
    %c0_114 = arith.constant 0 : index
    %384 = vector.load %arg5[%c2_112, %c0_113, %c0_114] : memref<3x128x32xbf16, #tpu.memory_space<vmem>>, vector<1x128x32xbf16>
    %385 = vector.shape_cast %384 : vector<1x128x32xbf16> to vector<128x32xbf16>
    %cst_115 = arith.constant dense<0.000000e+00> : vector<16x32xf32>
    %386 = tpu.matmul %383, %385, %cst_115 {dimension_numbers = #tpu.dot_dimension_numbers<[1], [0], [0], [1], [0, 0, 1, 1], [], []>} : vector<16x128xbf16>, vector<128x32xbf16>, vector<16x32xf32> -> vector<16x32xf32>
    %387 = vector.extract_strided_slice %284 {offsets = [5, 0], sizes = [1, 32], strides = [1, 1]} : vector<6x32xf32> to vector<1x32xf32>
    %388 = vector.broadcast %387 : vector<1x32xf32> to vector<16x32xf32>
    %389 = arith.addf %386, %388 : vector<16x32xf32>
    %390 = arith.addf %373, %389 : vector<16x32xf32>
    %391 = vector.extract_strided_slice %284 {offsets = [3, 0], sizes = [1, 32], strides = [1, 1]} : vector<6x32xf32> to vector<1x32xf32>
    %392 = vector.extract_strided_slice %284 {offsets = [4, 0], sizes = [1, 32], strides = [1, 1]} : vector<6x32xf32> to vector<1x32xf32>
    %cst_116 = arith.constant dense<0.000000e+00> : vector<16xf32>
    %393 = vector.multi_reduction <add>, %390, %cst_116 [1] : vector<16x32xf32> to vector<16xf32>
    %394 = vector.shape_cast %393 : vector<16xf32> to vector<16x1xf32>
    %cst_117 = arith.constant 3.200000e+01 : f32
    %395 = vector.broadcast %cst_117 : f32 to vector<16x1xf32>
    %396 = arith.divf %394, %395 : vector<16x1xf32>
    %397 = vector.broadcast %396 : vector<16x1xf32> to vector<16x32xf32>
    %398 = arith.subf %390, %397 : vector<16x32xf32>
    %399 = arith.mulf %398, %398 : vector<16x32xf32>
    %cst_118 = arith.constant dense<0.000000e+00> : vector<16xf32>
    %400 = vector.multi_reduction <add>, %399, %cst_118 [1] : vector<16x32xf32> to vector<16xf32>
    %401 = vector.shape_cast %400 : vector<16xf32> to vector<16x1xf32>
    %cst_119 = arith.constant 3.200000e+01 : f32
    %402 = vector.broadcast %cst_119 : f32 to vector<16x1xf32>
    %403 = arith.divf %401, %402 : vector<16x1xf32>
    %404 = vector.broadcast %396 : vector<16x1xf32> to vector<16x32xf32>
    %405 = arith.subf %390, %404 : vector<16x32xf32>
    %cst_120 = arith.constant 9.99999974E-6 : f32
    %406 = vector.broadcast %cst_120 : f32 to vector<16x1xf32>
    %407 = arith.addf %403, %406 : vector<16x1xf32>
    %408 = math.rsqrt %407 : vector<16x1xf32>
    %409 = vector.broadcast %408 : vector<16x1xf32> to vector<16x32xf32>
    %410 = arith.mulf %405, %409 : vector<16x32xf32>
    %411 = vector.broadcast %391 : vector<1x32xf32> to vector<16x32xf32>
    %412 = arith.mulf %410, %411 : vector<16x32xf32>
    %413 = vector.broadcast %392 : vector<1x32xf32> to vector<16x32xf32>
    %414 = arith.addf %412, %413 : vector<16x32xf32>
    %415 = vector.shape_cast %414 : vector<16x32xf32> to vector<1x16x32xf32>
    %416 = vector.extract_strided_slice %415 {offsets = [0, 0, 0], sizes = [1, 9, 32], strides = [1, 1, 1]} : vector<1x16x32xf32> to vector<1x9x32xf32>
    %c0_121 = arith.constant 0 : index
    %c0_122 = arith.constant 0 : index
    %c0_123 = arith.constant 0 : index
    %417 = vector.load %arg8[%c0_121, %c0_122, %c0_123] : memref<1x9x32xf32, #tpu.memory_space<vmem>>, vector<1x9x32xf32>
    tpu.vector_store %arg8[%c0_121, %c0_122, %c0_123], %416 {strides = array<i32>} : memref<1x9x32xf32, #tpu.memory_space<vmem>>, vector<1x9x32xf32>,
    return
  }
  func.func @transform_0(%arg0: i32) -> (i32, i32, i32) {
    %c0_i32 = arith.constant 0 : i32
    %c0_i32_0 = arith.constant 0 : i32
    %c0_i32_1 = arith.constant 0 : i32
    return %arg0, %c0_i32, %c0_i32_0 : i32, i32, i32
  }
  func.func @transform_1(%arg0: i32) -> (i32, i32) {
    %c0_i32 = arith.constant 0 : i32
    %c0_i32_0 = arith.constant 0 : i32
    %c0_i32_1 = arith.constant 0 : i32
    return %c0_i32, %c0_i32_0 : i32, i32
  }
  func.func @transform_2(%arg0: i32) -> (i32, i32, i32) {
    %c0_i32 = arith.constant 0 : i32
    %c0_i32_0 = arith.constant 0 : i32
    %c0_i32_1 = arith.constant 0 : i32
    %c0_i32_2 = arith.constant 0 : i32
    return %c0_i32, %c0_i32_0, %c0_i32_1 : i32, i32, i32
  }
  func.func @transform_3(%arg0: i32) -> (i32, i32, i32) {
    %c0_i32 = arith.constant 0 : i32
    %c0_i32_0 = arith.constant 0 : i32
    %c0_i32_1 = arith.constant 0 : i32
    %c0_i32_2 = arith.constant 0 : i32
    return %c0_i32, %c0_i32_0, %c0_i32_1 : i32, i32, i32
  }
  func.func @transform_4(%arg0: i32) -> (i32, i32, i32) {
    %c0_i32 = arith.constant 0 : i32
    %c0_i32_0 = arith.constant 0 : i32
    %c0_i32_1 = arith.constant 0 : i32
    %c0_i32_2 = arith.constant 0 : i32
    return %c0_i32, %c0_i32_0, %c0_i32_1 : i32, i32, i32
  }
  func.func @transform_5(%arg0: i32) -> (i32, i32, i32) {
    %c0_i32 = arith.constant 0 : i32
    %c0_i32_0 = arith.constant 0 : i32
    %c0_i32_1 = arith.constant 0 : i32
    %c0_i32_2 = arith.constant 0 : i32
    return %c0_i32, %c0_i32_0, %c0_i32_1 : i32, i32, i32
  }
  func.func @transform_6(%arg0: i32) -> (i32, i32, i32) {
    %c0_i32 = arith.constant 0 : i32
    %c0_i32_0 = arith.constant 0 : i32
    %c0_i32_1 = arith.constant 0 : i32
    %c0_i32_2 = arith.constant 0 : i32
    return %c0_i32, %c0_i32_0, %c0_i32_1 : i32, i32, i32
  }
  func.func @transform_7(%arg0: i32) -> (i32, i32, i32) {
    %c0_i32 = arith.constant 0 : i32
    %c0_i32_0 = arith.constant 0 : i32
    %c0_i32_1 = arith.constant 0 : i32
    return %arg0, %c0_i32, %c0_i32_0 : i32, i32, i32
  }
}

</mosaic_0001>

<llo_original>
// kernel: tpu_custom_call.1
$region0: #{tpu_custom_call.1}
  #allocation0 [shape = 'u32[]', space=smem, size = 0x4, offset = 0x4, fixed_abs, tag = 'smem constant byte address 0x4 - core index']
  #allocation1 [shape = 'u32[144,128]{1,0:T(1,128)}', space=vmem, size = 0x12000, scoped, tag = 'internal scratch']
  %s0 = inlined_call_operand.vmem [shape: f32[2,16,32], index: 0, kind: input, shape index: {}]
  %s1 = inlined_call_operand.vmem [shape: f32[16,32], index: 1, kind: input, shape index: {}]
  %s2 = inlined_call_operand.vmem [shape: bf16[3,32,128], index: 2, kind: input, shape index: {}]
  %s3 = inlined_call_operand.vmem [shape: bf16[3,32,128], index: 3, kind: input, shape index: {}]
  %s4 = inlined_call_operand.vmem [shape: bf16[3,128,32], index: 4, kind: input, shape index: {}]
  %s5 = inlined_call_operand.vmem [shape: f32[3,2,128], index: 5, kind: input, shape index: {}]
  %s6 = inlined_call_operand.vmem [shape: f32[3,6,32], index: 6, kind: input, shape index: {}]
  %s7 = inlined_call_operand.vmem [shape: f32[2,9,32], index: 7, kind: output, shape index: {}]
  %s8 = sld [smem:[#allocation0]]
  $region61: #{tpu_custom_call.1} parent=0
    _
  %s10 = ssub.s32 1, %s8
  %s11 = scalar_select 0, %s10, %s8
  loop: start=0, step=1, limit=4
  $region2: #{tpu_custom_call.1} parent=0 // loop_pre_header
    _
  $region3: #{tpu_custom_call.1} parent=0 // loop_header
    %s13 = sphi 0, %s17
    %p14 = scmp.ge.s32.totalorder %s13, 4
    %s23 = sphi 0, %s25
    %s26 = sphi 0, %s23
    %s27 = sphi 0, %s26
    %s43 = sphi 0, %s27
    %s47 = sphi 0, %s47
    %s49 = sphi 0, %s47
    %s50 = sphi 0, %s49
    %s64 = sphi 0, %s50
    %s68 = sphi 0, %s68
    %s70 = sphi 0, %s68
    %s71 = sphi 0, %s70
    %s85 = sphi 0, %s71
    %s89 = sphi 0, %s89
    %s91 = sphi 0, %s89
    %s92 = sphi 0, %s91
    %s106 = sphi 0, %s92
    %s110 = sphi 0, %s110
    %s112 = sphi 0, %s110
    %s113 = sphi 0, %s112
    %s127 = sphi 0, %s113
    %s131 = sphi 0, %s131
    %s133 = sphi 0, %s131
    %s134 = sphi 0, %s133
    %s148 = sphi 0, %s134
    %s152 = sphi 0, %s152
    %s154 = sphi 0, %s152
    %s155 = sphi 0, %s154
    %s169 = sphi 0, %s155
    %s175 = sphi 0, %s177
    %s178 = sphi 0, %s175
    %s179 = sphi 0, %s178
    %s195 = sphi 0, %s179
  $region4: #{tpu_custom_call.1} parent=0 // loop_header_branch
    %16 = sbr.rel (%p14) target = $region8
  $region5: #{tpu_custom_call.1} parent=0 // loop_body
    %s18 = ssub.s32 %s13, 1
    %s19 = ssub.s32 %s13, 2
    %s20 = sadd.s32 %s13, 1
    %s21 = ssub.s32 %s13, %s20
    %p22 = scmp.eq.s32.totalorder %s21, 0
    %s24 = sadd.s32 %s23, 1
    %s25 = scalar_select %p22, %s23, %s24
    %p28 = pneg %p22
    %p29 = scmp.eq.s32.totalorder %s13, 1
    %p30 = por %p28, %p29
    %p31 = scmp.ne.s32.totalorder %s23, %s26
    %p32 = scmp.eq.s32.totalorder %s13, 0
    %p33 = por %p31, %p32
    %p34 = scmp.ne.s32.totalorder %s23, %s26
    %p35 = scmp.eq.s32.totalorder %s18, 1
    %p36 = por %p34, %p35
    %p37 = scmp.ne.s32.totalorder %s26, %s27
    %p38 = scmp.eq.s32.totalorder %s18, 0
    %p39 = por %p37, %p38
    %p40 = scmp.ne.s32.totalorder %s26, %s27
    %p41 = scmp.eq.s32.totalorder %s19, 1
    %p42 = por %p40, %p41
    %p44 = scmp.ne.s32.totalorder %s27, %s43
    %p45 = scmp.eq.s32.totalorder %s19, 0
    %p46 = por %p44, %p45
    %s48 = sadd.s32 %s47, 1
    %p51 = scmp.eq.s32.totalorder %s13, 1
    %p52 = scmp.ne.s32.totalorder %s47, %s49
    %p53 = scmp.eq.s32.totalorder %s13, 0
    %p54 = por %p52, %p53
    %p55 = scmp.ne.s32.totalorder %s47, %s49
    %p56 = scmp.eq.s32.totalorder %s18, 1
    %p57 = por %p55, %p56
    %p58 = scmp.ne.s32.totalorder %s49, %s50
    %p59 = scmp.eq.s32.totalorder %s18, 0
    %p60 = por %p58, %p59
    %p61 = scmp.ne.s32.totalorder %s49, %s50
    %p62 = scmp.eq.s32.totalorder %s19, 1
    %p63 = por %p61, %p62
    %p65 = scmp.ne.s32.totalorder %s50, %s64
    %p66 = scmp.eq.s32.totalorder %s19, 0
    %p67 = por %p65, %p66
    %s69 = sadd.s32 %s68, 1
    %p72 = scmp.eq.s32.totalorder %s13, 1
    %p73 = scmp.ne.s32.totalorder %s68, %s70
    %p74 = scmp.eq.s32.totalorder %s13, 0
    %p75 = por %p73, %p74
    %p76 = scmp.ne.s32.totalorder %s68, %s70
    %p77 = scmp.eq.s32.totalorder %s18, 1
    %p78 = por %p76, %p77
    %p79 = scmp.ne.s32.totalorder %s70, %s71
    %p80 = scmp.eq.s32.totalorder %s18, 0
    %p81 = por %p79, %p80
    %p82 = scmp.ne.s32.totalorder %s70, %s71
    %p83 = scmp.eq.s32.totalorder %s19, 1
    %p84 = por %p82, %p83
    %p86 = scmp.ne.s32.totalorder %s71, %s85
    %p87 = scmp.eq.s32.totalorder %s19, 0
    %p88 = por %p86, %p87
    %s90 = sadd.s32 %s89, 1
    %p93 = scmp.eq.s32.totalorder %s13, 1
    %p94 = scmp.ne.s32.totalorder %s89, %s91
    %p95 = scmp.eq.s32.totalorder %s13, 0
    %p96 = por %p94, %p95
    %p97 = scmp.ne.s32.totalorder %s89, %s91
    %p98 = scmp.eq.s32.totalorder %s18, 1
    %p99 = por %p97, %p98
    %p100 = scmp.ne.s32.totalorder %s91, %s92
    %p101 = scmp.eq.s32.totalorder %s18, 0
    %p102 = por %p100, %p101
    %p103 = scmp.ne.s32.totalorder %s91, %s92
    %p104 = scmp.eq.s32.totalorder %s19, 1
    %p105 = por %p103, %p104
    %p107 = scmp.ne.s32.totalorder %s92, %s106
    %p108 = scmp.eq.s32.totalorder %s19, 0
    %p109 = por %p107, %p108
    %s111 = sadd.s32 %s110, 1
    %p114 = scmp.eq.s32.totalorder %s13, 1
    %p115 = scmp.ne.s32.totalorder %s110, %s112
    %p116 = scmp.eq.s32.totalorder %s13, 0
    %p117 = por %p115, %p116
    %p118 = scmp.ne.s32.totalorder %s110, %s112
    %p119 = scmp.eq.s32.totalorder %s18, 1
    %p120 = por %p118, %p119
    %p121 = scmp.ne.s32.totalorder %s112, %s113
    %p122 = scmp.eq.s32.totalorder %s18, 0
    %p123 = por %p121, %p122
    %p124 = scmp.ne.s32.totalorder %s112, %s113
    %p125 = scmp.eq.s32.totalorder %s19, 1
    %p126 = por %p124, %p125
    %p128 = scmp.ne.s32.totalorder %s113, %s127
    %p129 = scmp.eq.s32.totalorder %s19, 0
    %p130 = por %p128, %p129
    %s132 = sadd.s32 %s131, 1
    %p135 = scmp.eq.s32.totalorder %s13, 1
    %p136 = scmp.ne.s32.totalorder %s131, %s133
    %p137 = scmp.eq.s32.totalorder %s13, 0
    %p138 = por %p136, %p137
    %p139 = scmp.ne.s32.totalorder %s131, %s133
    %p140 = scmp.eq.s32.totalorder %s18, 1
    %p141 = por %p139, %p140
    %p142 = scmp.ne.s32.totalorder %s133, %s134
    %p143 = scmp.eq.s32.totalorder %s18, 0
    %p144 = por %p142, %p143
    %p145 = scmp.ne.s32.totalorder %s133, %s134
    %p146 = scmp.eq.s32.totalorder %s19, 1
    %p147 = por %p145, %p146
    %p149 = scmp.ne.s32.totalorder %s134, %s148
    %p150 = scmp.eq.s32.totalorder %s19, 0
    %p151 = por %p149, %p150
    %s153 = sadd.s32 %s152, 1
    %p156 = scmp.eq.s32.totalorder %s13, 1
    %p157 = scmp.ne.s32.totalorder %s152, %s154
    %p158 = scmp.eq.s32.totalorder %s13, 0
    %p159 = por %p157, %p158
    %p160 = scmp.ne.s32.totalorder %s152, %s154
    %p161 = scmp.eq.s32.totalorder %s18, 1
    %p162 = por %p160, %p161
    %p163 = scmp.ne.s32.totalorder %s154, %s155
    %p164 = scmp.eq.s32.totalorder %s18, 0
    %p165 = por %p163, %p164
    %p166 = scmp.ne.s32.totalorder %s154, %s155
    %p167 = scmp.eq.s32.totalorder %s19, 1
    %p168 = por %p166, %p167
    %p170 = scmp.ne.s32.totalorder %s155, %s169
    %p171 = scmp.eq.s32.totalorder %s19, 0
    %p172 = por %p170, %p171
    %s173 = ssub.s32 %s13, %s20
    %p174 = scmp.eq.s32.totalorder %s173, 0
    %s176 = sadd.s32 %s175, 1
    %s177 = scalar_select %p174, %s175, %s176
    %p180 = pneg %p174
    %p181 = scmp.eq.s32.totalorder %s13, 1
    %p182 = por %p180, %p181
    %p183 = scmp.ne.s32.totalorder %s175, %s178
    %p184 = scmp.eq.s32.totalorder %s13, 0
    %p185 = por %p183, %p184
    %p186 = scmp.ne.s32.totalorder %s175, %s178
    %p187 = scmp.eq.s32.totalorder %s18, 1
    %p188 = por %p186, %p187
    %p189 = scmp.ne.s32.totalorder %s178, %s179
    %p190 = scmp.eq.s32.totalorder %s18, 0
    %p191 = por %p189, %p190
    %p192 = scmp.ne.s32.totalorder %s178, %s179
    %p193 = scmp.eq.s32.totalorder %s19, 1
    %p194 = por %p192, %p193
    %p196 = scmp.ne.s32.totalorder %s179, %s195
    %p197 = scmp.eq.s32.totalorder %s19, 0
    %p198 = por %p196, %p197
    %p199 = scmp.le.s32.totalorder 1, %s13
    %p200 = scmp.lt.s32.totalorder %s13, 3
    %p201 = pnand %p199, %p200
    %p202 = pneg %p201
    // Predicated region
    $region9: #{tpu_custom_call.1} parent=5 // pred_check
      _
    $region10: #{tpu_custom_call.1} parent=5 // pred_check_branch
      %204 = sbr.rel (%p201) target = $region12
    $region11: #{tpu_custom_call.1} parent=5 // pred_region
      %s205 = ssub.s32 %s13, 1
      // Predicated region
      $region13: #{tpu_custom_call.1} parent=11 // pred_check
        %p206 = pneg %p60
      $region14: #{tpu_custom_call.1} parent=11 // pred_check_branch
        %208 = sbr.rel (%p206) target = $region16
      $region15: #{tpu_custom_call.1} parent=11 // pred_region
        _
      $region16: #{tpu_custom_call.1} parent=11 // pred_fallthru
        _
      // Predicated region
      $region17: #{tpu_custom_call.1} parent=11 // pred_check
        %p209 = pneg %p81
      $region18: #{tpu_custom_call.1} parent=11 // pred_check_branch
        %211 = sbr.rel (%p209) target = $region20
      $region19: #{tpu_custom_call.1} parent=11 // pred_region
        _
      $region20: #{tpu_custom_call.1} parent=11 // pred_fallthru
        _
      // Predicated region
      $region21: #{tpu_custom_call.1} parent=11 // pred_check
        %p212 = pneg %p102
      $region22: #{tpu_custom_call.1} parent=11 // pred_check_branch
        %214 = sbr.rel (%p212) target = $region24
      $region23: #{tpu_custom_call.1} parent=11 // pred_region
        _
      $region24: #{tpu_custom_call.1} parent=11 // pred_fallthru
        _
      // Predicated region
      $region25: #{tpu_custom_call.1} parent=11 // pred_check
        %p215 = pneg %p123
      $region26: #{tpu_custom_call.1} parent=11 // pred_check_branch
        %217 = sbr.rel (%p215) target = $region28
      $region27: #{tpu_custom_call.1} parent=11 // pred_region
        _
      $region28: #{tpu_custom_call.1} parent=11 // pred_fallthru
        _
      // Predicated region
      $region29: #{tpu_custom_call.1} parent=11 // pred_check
        %p218 = pneg %p144
      $region30: #{tpu_custom_call.1} parent=11 // pred_check_branch
        %220 = sbr.rel (%p218) target = $region32
      $region31: #{tpu_custom_call.1} parent=11 // pred_region
        _
      $region32: #{tpu_custom_call.1} parent=11 // pred_fallthru
        _
      // Predicated region
      $region33: #{tpu_custom_call.1} parent=11 // pred_check
        %p221 = pneg %p165
      $region34: #{tpu_custom_call.1} parent=11 // pred_check_branch
        %223 = sbr.rel (%p221) target = $region36
      $region35: #{tpu_custom_call.1} parent=11 // pred_region
        _
      $region36: #{tpu_custom_call.1} parent=11 // pred_fallthru
        _
    $region12: #{tpu_custom_call.1} parent=5 // pred_fallthru
      _
    %p224 = scmp.lt.s32.totalorder %s13, 2
    // Predicated region
    $region37: #{tpu_custom_call.1} parent=5 // pred_check
      %p225 = pneg %p224
    $region38: #{tpu_custom_call.1} parent=5 // pred_check_branch
      %227 = sbr.rel (%p225) target = $region40
    $region39: #{tpu_custom_call.1} parent=5 // pred_region
      // Predicated region
      $region41: #{tpu_custom_call.1} parent=39 // pred_check
        %p228 = pneg %p33
      $region42: #{tpu_custom_call.1} parent=39 // pred_check_branch
        %230 = sbr.rel (%p228) target = $region44
      $region43: #{tpu_custom_call.1} parent=39 // pred_region
        %p231 = scmp.lt.s32.totalorder %s13, 1
        %s232 = scalar_select %p231, %s13, 1
        %s233 = smul.addr %s232, 2
        %s234 = smul.addr %s233, 8
        %s235 = scalar_lea.vmem %s0, %s234
      $region44: #{tpu_custom_call.1} parent=39 // pred_fallthru
        _
    $region40: #{tpu_custom_call.1} parent=5 // pred_fallthru
      _
    %p236 = scmp.le.s32.totalorder 1, %s13
    %p237 = scmp.lt.s32.totalorder %s13, 3
    %p238 = pnand %p236, %p237
    %p239 = pneg %p238
    // Predicated region
    $region45: #{tpu_custom_call.1} parent=5 // pred_check
      _
    $region46: #{tpu_custom_call.1} parent=5 // pred_check_branch
      %241 = sbr.rel (%p238) target = $region48
    $region47: #{tpu_custom_call.1} parent=5 // pred_region
      %s242 = ssub.s32 %s13, 1
      %p243 = scmp.lt.s32.totalorder %s18, 1
      %s244 = scalar_select %p243, %s18, 1
      %s245 = smul.addr %s244, 2
      %s246 = smul.addr %s245, 8
      %s247 = scalar_lea.vmem %s0, %s246
      %p248 = pneg %p39
      %p249 = pneg %p36
      %p250 = pneg %p60
      %p251 = pneg %p57
      %p252 = pneg %p81
      %p253 = pneg %p78
      %p254 = pneg %p102
      %p255 = pneg %p99
      %p256 = pneg %p123
      %p257 = pneg %p120
      %p258 = pneg %p144
      %p259 = pneg %p141
      %p260 = pneg %p165
      %p261 = pneg %p162
      %p262 = pneg %p191
      %p263 = pneg %p188
      %p264 = scmp.lt.s32.totalorder %s18, 1
      %s265 = scalar_select %p264, %s18, 1
      %s266 = smul.addr %s265, 2
      %s267 = smul.addr %s266, 8
      %s268 = scalar_lea.vmem %s7, %s267
      %p269 = scmp.lt.s32.totalorder %s18, 1
      %s270 = scalar_select %p269, %s18, 1
      %s271 = smul.addr %s270, 2
      %s272 = smul.addr %s271, 8
      %s273 = scalar_lea.vmem %s0, %s272
      %p274 = scmp.lt.s32.totalorder %s18, 1
      %s275 = scalar_select %p274, %s18, 1
      %s276 = smul.addr %s275, 2
      %s277 = smul.addr %s276, 8
      %s278 = scalar_lea.vmem %s7, %s277
      %v280 = vld [vmem:[%s273] sm:$0xff]
      %v281 = vld [vmem:[%s273 + $0x8] sm:$0xff]
      %v282 = vmul.f32 %v280, 5.656854
      %v283 = vmul.f32 %v281, 5.656854
      %v284 = vld [vmem:[%s1] sm:$0xff]
      %v285 = vld [vmem:[%s1 + $0x8] sm:$0xff]
      %v286 = vadd.f32 %v282, %v284
      %v287 = vadd.f32 %v283, %v285
      %v288 = vlaneseq
      %v289 = vand.u32 %v288, 127
      %vm290 = vcmp.ge.s32.totalorder %v289, 9
      %v291 = vsel %vm290, -1e+30, 0.0
      %v292 = vld [vmem:[%s5] sm:$0x3]
      %v293 = vld [vmem:[%s6] sm:$0x3f]
      %v294 = vpack.c.bf16 %v287, %v286
      %v295 = vld [vmem:[%s2] sm:$0xf]
      %v296 = vld [vmem:[%s2 + $0x4] sm:$0xf]
      %v297 = vld [vmem:[%s2 + $0x8] sm:$0xf]
      %v298 = vld [vmem:[%s2 + $0xc] sm:$0xf]
      %v299 = vlaneseq
      %v300 = vshrl.u32 %v299, 7
      %v301 = vsub.s32 0, %v300
      %v302 = vrot.slane %v292, %v301
      %v307 = vunpack.c.l.b16 %v295
      %v308 = vunpack.c.l.b16 %v296
      %v309 = vunpack.c.l.b16 %v297
      %v310 = vunpack.c.l.b16 %v298
      %v311 = vpack.c.b16 %v308, %v307
      %v312 = vpack.c.b16 %v310, %v309
      %vm315 = vcmask 261120
      %v317 = vsel %vm315, %v294, 0
      %319 = vmatprep.subr.bf16.mxu0 0
      %320 = vmatpush1.bf16.msra.mxu0 %v311
      %321 = vmatprep.subr.bf16.mxu0 0
      %322 = vmatpush1.bf16.msra.mxu0 %v312
      %323 = vmatprep.subr.bf16.mxu0 0
      %324 = vmatpush1.bf16.msra.mxu0 0
      %325 = vmatprep.subr.bf16.mxu0 0
      %326 = vmatpush1.bf16.msra.mxu0 0
      %327 = vmatprep.subr.bf16.mxu0 0
      %328 = vmatpush1.bf16.msra.mxu0 0
      %329 = vmatprep.subr.bf16.mxu0 0
      %330 = vmatpush1.bf16.msra.mxu0 0
      %331 = vmatprep.subr.bf16.mxu0 0
      %332 = vmatpush1.bf16.msra.mxu0 0
      %333 = vmatprep.subr.bf16.mxu0 0
      %334 = vmatpush1.bf16.msra.mxu0 0
      %335 = vmatprep.subr.bf16.mxu0 0
      %336 = vmatpush1.bf16.msra.mxu0 0
      %337 = vmatprep.subr.bf16.mxu0 0
      %338 = vmatpush1.bf16.msra.mxu0 0
      %339 = vmatprep.subr.bf16.mxu0 0
      %340 = vmatpush1.bf16.msra.mxu0 0
      %341 = vmatprep.subr.bf16.mxu0 0
      %342 = vmatpush1.bf16.msra.mxu0 0
      %343 = vmatprep.subr.bf16.mxu0 0
      %344 = vmatpush1.bf16.msra.mxu0 0
      %345 = vmatprep.subr.bf16.mxu0 0
      %346 = vmatpush1.bf16.msra.mxu0 0
      %347 = vmatprep.subr.bf16.mxu0 0
      %348 = vmatpush1.bf16.msra.mxu0 0
      %349 = vmatprep.subr.bf16.mxu0 0
      %350 = vmatpush1.bf16.msra.mxu0 0
      %351 = vmatprep.mubr.bf16.mxu0 0
      %352 = vmatmul.mubr.bf16.gmra.mrb[0].mxu0 %v317
      %v353 = vpop.f32.mrb[0].mxu0
      %v354 = vadd.f32 %v302, %v353
      %v355 = vpop.f32.mrb[0].mxu0
      %v356 = vpop.f32.mrb[0].mxu0
      %v357 = vadd.f32 %v302, %v356
      %v358 = vpop.f32.mrb[0].mxu0
      %359 = vdwg.mxu0
      %v360 = vpack.c.bf16 %v357, %v354
      %362 = vrot.lane.b32.xlu0 %v360, 96
      %v363 = vpop.permute.xlu0 %362
      %vm364 = vcmask 130048
      %v366 = vsel %vm364, %v360, 0
      %v369 = vsel %vm364, %v363, 0
      %371 = vmatprep.subr.bf16.mxu0 0
      %372 = vmatpush1.bf16.xpose.msra.mxu0 %v369
      %373 = vmatprep.subr.bf16.mxu0 0
      %374 = vmatpush1.bf16.xpose.msra.mxu0 0
      %375 = vmatprep.subr.bf16.mxu0 0
      %376 = vmatpush1.bf16.xpose.msra.mxu0 0
      %377 = vmatprep.subr.bf16.mxu0 0
      %378 = vmatpush1.bf16.xpose.msra.mxu0 0
      %379 = vmatprep.subr.bf16.mxu0 0
      %380 = vmatpush1.bf16.xpose.msra.mxu0 0
      %381 = vmatprep.subr.bf16.mxu0 0
      %382 = vmatpush1.bf16.xpose.msra.mxu0 0
      %383 = vmatprep.subr.bf16.mxu0 0
      %384 = vmatpush1.bf16.xpose.msra.mxu0 0
      %385 = vmatprep.subr.bf16.mxu0 0
      %386 = vmatpush1.bf16.xpose.msra.mxu0 0
      %387 = vmatprep.subr.bf16.mxu0 0
      %388 = vmatpush1.bf16.xpose.msra.mxu0 0
      %389 = vmatprep.subr.bf16.mxu0 0
      %390 = vmatpush1.bf16.xpose.msra.mxu0 0
      %391 = vmatprep.subr.bf16.mxu0 0
      %392 = vmatpush1.bf16.xpose.msra.mxu0 0
      %393 = vmatprep.subr.bf16.mxu0 0
      %394 = vmatpush1.bf16.xpose.msra.mxu0 0
      %395 = vmatprep.subr.bf16.mxu0 0
      %396 = vmatpush1.bf16.xpose.msra.mxu0 0
      %397 = vmatprep.subr.bf16.mxu0 0
      %398 = vmatpush1.bf16.xpose.msra.mxu0 0
      %399 = vmatprep.subr.bf16.mxu0 0
      %400 = vmatpush1.bf16.xpose.msra.mxu0 0
      %401 = vmatprep.subr.bf16.mxu0 0
      %402 = vmatpush1.bf16.xpose.msra.mxu0 0
      %403 = vmatprep.mubr.bf16.mxu0 0
      %404 = vmatmul.mubr.bf16.gmra.mrb[0].mxu0 %v366
      %v405 = vpop.f32.mrb[0].mxu0
      %v406 = vadd.f32 0.0, %v405
      %v407 = vpop.f32.mrb[0].mxu0
      %v408 = vpop.f32.mrb[0].mxu0
      %v409 = vadd.f32 0.0, %v408
      %v410 = vpop.f32.mrb[0].mxu0
      %411 = vdwg.mxu0
      %v412 = vmul.f32 %v406, 0.25
      %v413 = vmul.f32 %v409, 0.25
      %v414 = vadd.f32 %v412, %v291
      %v415 = vadd.f32 %v413, %v291
      %v416 = vsel %vm364, %v414, -inf
      %417 = vmax.xlane.f32.xlu0 %v416
      %v418 = vpop.xlane.xlu0 %417
      %v419 = vsel %vm364, %v415, -inf
      %420 = vmax.xlane.f32.xlu0 %v419
      %v421 = vpop.xlane.xlu0 %420
      %v422 = vsub.f32 %v414, %v418
      %v423 = vsub.f32 %v415, %v421
      %v424 = vmul.f32 %v422, 1.442695
      %v425 = vpow.pop %v424
      %v426 = vmul.f32 %v423, 1.442695
      %v427 = vpow.pop %v426
      %v428 = vsel %vm364, %v425, 0.0
      %429 = vadd.xlane.f32.xlu0 %v428
      %v430 = vpop.xlane.xlu0 %429
      %v431 = vsel %vm364, %v427, 0.0
      %432 = vadd.xlane.f32.xlu0 %v431
      %v433 = vpop.xlane.xlu0 %432
      %v434 = vrcp.pop %v430
      %v435 = vrcp.pop %v433
      %v436 = vmul.f32 %v425, %v434
      %v437 = vmul.f32 %v427, %v435
      %v438 = vpack.c.bf16 %v437, %v436
      %439 = vrot.lane.b32.xlu0 %v360, 112
      %v440 = vpop.permute.xlu0 %439
      %441 = vrot.lane.b32.xlu0 %v360, 80
      %v442 = vpop.permute.xlu0 %441
      %v444 = vsel %vm364, %v440, 0
      %v447 = vsel %vm364, %v442, 0
      %449 = vmatprep.subr.bf16.mxu0 0
      %450 = vmatpush1.bf16.xpose.msra.mxu0 %v447
      %451 = vmatprep.subr.bf16.mxu0 0
      %452 = vmatpush1.bf16.xpose.msra.mxu0 0
      %453 = vmatprep.subr.bf16.mxu0 0
      %454 = vmatpush1.bf16.xpose.msra.mxu0 0
      %455 = vmatprep.subr.bf16.mxu0 0
      %456 = vmatpush1.bf16.xpose.msra.mxu0 0
      %457 = vmatprep.subr.bf16.mxu0 0
      %458 = vmatpush1.bf16.xpose.msra.mxu0 0
      %459 = vmatprep.subr.bf16.mxu0 0
      %460 = vmatpush1.bf16.xpose.msra.mxu0 0
      %461 = vmatprep.subr.bf16.mxu0 0
      %462 = vmatpush1.bf16.xpose.msra.mxu0 0
      %463 = vmatprep.subr.bf16.mxu0 0
      %464 = vmatpush1.bf16.xpose.msra.mxu0 0
      %465 = vmatprep.subr.bf16.mxu0 0
      %466 = vmatpush1.bf16.xpose.msra.mxu0 0
      %467 = vmatprep.subr.bf16.mxu0 0
      %468 = vmatpush1.bf16.xpose.msra.mxu0 0
      %469 = vmatprep.subr.bf16.mxu0 0
      %470 = vmatpush1.bf16.xpose.msra.mxu0 0
      %471 = vmatprep.subr.bf16.mxu0 0
      %472 = vmatpush1.bf16.xpose.msra.mxu0 0
      %473 = vmatprep.subr.bf16.mxu0 0
      %474 = vmatpush1.bf16.xpose.msra.mxu0 0
      %475 = vmatprep.subr.bf16.mxu0 0
      %476 = vmatpush1.bf16.xpose.msra.mxu0 0
      %477 = vmatprep.subr.bf16.mxu0 0
      %478 = vmatpush1.bf16.xpose.msra.mxu0 0
      %479 = vmatprep.subr.bf16.mxu0 0
      %480 = vmatpush1.bf16.xpose.msra.mxu0 0
      %481 = vmatprep.mubr.bf16.mxu0 0
      %482 = vmatmul.mubr.bf16.gmra.mrb[0].mxu0 %v444
      %v483 = vpop.f32.mrb[0].mxu0
      %v484 = vadd.f32 0.0, %v483
      %v485 = vpop.f32.mrb[0].mxu0
      %v486 = vpop.f32.mrb[0].mxu0
      %v487 = vadd.f32 0.0, %v486
      %v488 = vpop.f32.mrb[0].mxu0
      %489 = vdwg.mxu0
      %v490 = vmul.f32 %v484, 0.25
      %v491 = vmul.f32 %v487, 0.25
      %v492 = vadd.f32 %v490, %v291
      %v493 = vadd.f32 %v491, %v291
      %v494 = vsel %vm364, %v492, -inf
      %495 = vmax.xlane.f32.xlu0 %v494
      %v496 = vpop.xlane.xlu0 %495
      %v497 = vsel %vm364, %v493, -inf
      %498 = vmax.xlane.f32.xlu0 %v497
      %v499 = vpop.xlane.xlu0 %498
      %v500 = vsub.f32 %v492, %v496
      %v501 = vsub.f32 %v493, %v499
      %v502 = vmul.f32 %v500, 1.442695
      %v503 = vpow.pop %v502
      %v504 = vmul.f32 %v501, 1.442695
      %v505 = vpow.pop %v504
      %v506 = vsel %vm364, %v503, 0.0
      %507 = vadd.xlane.f32.xlu0 %v506
      %v508 = vpop.xlane.xlu0 %507
      %v509 = vsel %vm364, %v505, 0.0
      %510 = vadd.xlane.f32.xlu0 %v509
      %v511 = vpop.xlane.xlu0 %510
      %v512 = vrcp.pop %v508
      %v513 = vrcp.pop %v511
      %v514 = vmul.f32 %v503, %v512
      %v515 = vmul.f32 %v505, %v513
      %v516 = vpack.c.bf16 %v515, %v514
      %517 = vrot.lane.b32.xlu0 %v360, 32
      %v518 = vpop.permute.xlu0 %517
      %v521 = vsel %vm364, %v516, 0
      %523 = vmatprep.subr.bf16.mxu0 0
      %524 = vmatpush1.bf16.msra.mxu0 %v518
      %525 = vmatprep.subr.bf16.mxu0 0
      %526 = vmatpush1.bf16.msra.mxu0 0
      %527 = vmatprep.subr.bf16.mxu0 0
      %528 = vmatpush1.bf16.msra.mxu0 0
      %529 = vmatprep.subr.bf16.mxu0 0
      %530 = vmatpush1.bf16.msra.mxu0 0
      %531 = vmatprep.subr.bf16.mxu0 0
      %532 = vmatpush1.bf16.msra.mxu0 0
      %533 = vmatprep.subr.bf16.mxu0 0
      %534 = vmatpush1.bf16.msra.mxu0 0
      %535 = vmatprep.subr.bf16.mxu0 0
      %536 = vmatpush1.bf16.msra.mxu0 0
      %537 = vmatprep.subr.bf16.mxu0 0
      %538 = vmatpush1.bf16.msra.mxu0 0
      %539 = vmatprep.subr.bf16.mxu0 0
      %540 = vmatpush1.bf16.msra.mxu0 0
      %541 = vmatprep.subr.bf16.mxu0 0
      %542 = vmatpush1.bf16.msra.mxu0 0
      %543 = vmatprep.subr.bf16.mxu0 0
      %544 = vmatpush1.bf16.msra.mxu0 0
      %545 = vmatprep.subr.bf16.mxu0 0
      %546 = vmatpush1.bf16.msra.mxu0 0
      %547 = vmatprep.subr.bf16.mxu0 0
      %548 = vmatpush1.bf16.msra.mxu0 0
      %549 = vmatprep.subr.bf16.mxu0 0
      %550 = vmatpush1.bf16.msra.mxu0 0
      %551 = vmatprep.subr.bf16.mxu0 0
      %552 = vmatpush1.bf16.msra.mxu0 0
      %553 = vmatprep.subr.bf16.mxu0 0
      %554 = vmatpush1.bf16.msra.mxu0 0
      %555 = vmatprep.mubr.bf16.mxu0 0
      %556 = vmatmul.mubr.bf16.gmra.mrb[0].mxu0 %v521
      %v557 = vpop.f32.mrb[0].mxu0
      %v558 = vadd.f32 0.0, %v557
      %v559 = vpop.f32.mrb[0].mxu0
      %v560 = vpop.f32.mrb[0].mxu0
      %v561 = vadd.f32 0.0, %v560
      %v562 = vpop.f32.mrb[0].mxu0
      %563 = vdwg.mxu0
      %564 = vrot.lane.b32.xlu0 %v360, 64
      %v565 = vpop.permute.xlu0 %564
      %v568 = vsel %vm364, %v438, 0
      %570 = vmatprep.subr.bf16.mxu0 0
      %571 = vmatpush1.bf16.msra.mxu0 %v565
      %572 = vmatprep.subr.bf16.mxu0 0
      %573 = vmatpush1.bf16.msra.mxu0 0
      %574 = vmatprep.subr.bf16.mxu0 0
      %575 = vmatpush1.bf16.msra.mxu0 0
      %576 = vmatprep.subr.bf16.mxu0 0
      %577 = vmatpush1.bf16.msra.mxu0 0
      %578 = vmatprep.subr.bf16.mxu0 0
      %579 = vmatpush1.bf16.msra.mxu0 0
      %580 = vmatprep.subr.bf16.mxu0 0
      %581 = vmatpush1.bf16.msra.mxu0 0
      %582 = vmatprep.subr.bf16.mxu0 0
      %583 = vmatpush1.bf16.msra.mxu0 0
      %584 = vmatprep.subr.bf16.mxu0 0
      %585 = vmatpush1.bf16.msra.mxu0 0
      %586 = vmatprep.subr.bf16.mxu0 0
      %587 = vmatpush1.bf16.msra.mxu0 0
      %588 = vmatprep.subr.bf16.mxu0 0
      %589 = vmatpush1.bf16.msra.mxu0 0
      %590 = vmatprep.subr.bf16.mxu0 0
      %591 = vmatpush1.bf16.msra.mxu0 0
      %592 = vmatprep.subr.bf16.mxu0 0
      %593 = vmatpush1.bf16.msra.mxu0 0
      %594 = vmatprep.subr.bf16.mxu0 0
      %595 = vmatpush1.bf16.msra.mxu0 0
      %596 = vmatprep.subr.bf16.mxu0 0
      %597 = vmatpush1.bf16.msra.mxu0 0
      %598 = vmatprep.subr.bf16.mxu0 0
      %599 = vmatpush1.bf16.msra.mxu0 0
      %600 = vmatprep.subr.bf16.mxu0 0
      %601 = vmatpush1.bf16.msra.mxu0 0
      %602 = vmatprep.mubr.bf16.mxu0 0
      %603 = vmatmul.mubr.bf16.gmra.mrb[0].mxu0 %v568
      %v604 = vpop.f32.mrb[0].mxu0
      %v605 = vadd.f32 %v558, %v604
      %v606 = vpop.f32.mrb[0].mxu0
      %v607 = vpop.f32.mrb[0].mxu0
      %v608 = vadd.f32 %v561, %v607
      %v609 = vpop.f32.mrb[0].mxu0
      %610 = vdwg.mxu0
      %v611 = vlaneseq
      %v612 = vshrl.u32 %v611, 7
      %v613 = vsub.s32 0, %v612
      %v614 = vrot.slane %v293, %v613
      %v615 = vadd.f32 %v605, %v614
      %v616 = vadd.f32 %v608, %v614
      %v617 = vadd.f32 %v286, %v615
      %v618 = vadd.f32 %v287, %v616
      %v619 = vsel %vm315, %v617, 0.0
      %620 = vadd.xlane.f32.xlu0 %v619
      %v621 = vpop.xlane.xlu0 %620
      %v622 = vsel %vm315, %v618, 0.0
      %623 = vadd.xlane.f32.xlu0 %v622
      %v624 = vpop.xlane.xlu0 %623
      %v625 = vrcp.pop 32.0
      %v626 = vmul.f32 %v621, %v625
      %v627 = vmul.f32 %v624, %v625
      %v628 = vsub.f32 %v617, %v626
      %v629 = vsub.f32 %v618, %v627
      %v630 = vmul.f32 %v628, %v628
      %v631 = vmul.f32 %v629, %v629
      %v632 = vsel %vm315, %v630, 0.0
      %633 = vadd.xlane.f32.xlu0 %v632
      %v634 = vpop.xlane.xlu0 %633
      %v635 = vsel %vm315, %v631, 0.0
      %636 = vadd.xlane.f32.xlu0 %v635
      %v637 = vpop.xlane.xlu0 %636
      %v638 = vmul.f32 %v634, %v625
      %v639 = vmul.f32 %v637, %v625
      %v640 = vadd.f32 %v638, 1e-05
      %v641 = vadd.f32 %v639, 1e-05
      %v642 = vrsqrt.pop %v640
      %v643 = vrsqrt.pop %v641
      %v644 = vmul.f32 %v628, %v642
      %v645 = vmul.f32 %v629, %v643
      %v646 = vlaneseq
      %v647 = vshrl.u32 %v646, 7
      %v648 = vsub.s32 1, %v647
      %v649 = vrot.slane %v293, %v648
      %v650 = vmul.f32 %v644, %v649
      %v651 = vmul.f32 %v645, %v649
      %v652 = vlaneseq
      %v653 = vshrl.u32 %v652, 7
      %v654 = vsub.s32 2, %v653
      %v655 = vrot.slane %v293, %v654
      %v656 = vadd.f32 %v650, %v655
      %v657 = vadd.f32 %v651, %v655
      %v658 = vpack.c.bf16 %v657, %v656
      %v659 = vld [vmem:[%s3] sm:$0xf]
      %v660 = vld [vmem:[%s3 + $0x4] sm:$0xf]
      %v661 = vld [vmem:[%s3 + $0x8] sm:$0xf]
      %v662 = vld [vmem:[%s3 + $0xc] sm:$0xf]
      %v663 = vlaneseq
      %v664 = vshrl.u32 %v663, 7
      %v665 = vsub.s32 1, %v664
      %v666 = vrot.slane %v292, %v665
      %v671 = vunpack.c.l.b16 %v659
      %v672 = vunpack.c.l.b16 %v660
      %v673 = vunpack.c.l.b16 %v661
      %v674 = vunpack.c.l.b16 %v662
      %v675 = vpack.c.b16 %v672, %v671
      %v676 = vpack.c.b16 %v674, %v673
      %v680 = vsel %vm315, %v658, 0
      %682 = vmatprep.subr.bf16.mxu0 0
      %683 = vmatpush1.bf16.msra.mxu0 %v675
      %684 = vmatprep.subr.bf16.mxu0 0
      %685 = vmatpush1.bf16.msra.mxu0 %v676
      %686 = vmatprep.subr.bf16.mxu0 0
      %687 = vmatpush1.bf16.msra.mxu0 0
      %688 = vmatprep.subr.bf16.mxu0 0
      %689 = vmatpush1.bf16.msra.mxu0 0
      %690 = vmatprep.subr.bf16.mxu0 0
      %691 = vmatpush1.bf16.msra.mxu0 0
      %692 = vmatprep.subr.bf16.mxu0 0
      %693 = vmatpush1.bf16.msra.mxu0 0
      %694 = vmatprep.subr.bf16.mxu0 0
      %695 = vmatpush1.bf16.msra.mxu0 0
      %696 = vmatprep.subr.bf16.mxu0 0
      %697 = vmatpush1.bf16.msra.mxu0 0
      %698 = vmatprep.subr.bf16.mxu0 0
      %699 = vmatpush1.bf16.msra.mxu0 0
      %700 = vmatprep.subr.bf16.mxu0 0
      %701 = vmatpush1.bf16.msra.mxu0 0
      %702 = vmatprep.subr.bf16.mxu0 0
      %703 = vmatpush1.bf16.msra.mxu0 0
      %704 = vmatprep.subr.bf16.mxu0 0
      %705 = vmatpush1.bf16.msra.mxu0 0
      %706 = vmatprep.subr.bf16.mxu0 0
      %707 = vmatpush1.bf16.msra.mxu0 0
      %708 = vmatprep.subr.bf16.mxu0 0
      %709 = vmatpush1.bf16.msra.mxu0 0
      %710 = vmatprep.subr.bf16.mxu0 0
      %711 = vmatpush1.bf16.msra.mxu0 0
      %712 = vmatprep.subr.bf16.mxu0 0
      %713 = vmatpush1.bf16.msra.mxu0 0
      %714 = vmatprep.mubr.bf16.mxu0 0
      %715 = vmatmul.mubr.bf16.gmra.mrb[0].mxu0 %v680
      %v716 = vpop.f32.mrb[0].mxu0
      %v717 = vadd.f32 %v666, %v716
      %v718 = vpop.f32.mrb[0].mxu0
      %v719 = vpop.f32.mrb[0].mxu0
      %v720 = vadd.f32 %v666, %v719
      %v721 = vpop.f32.mrb[0].mxu0
      %722 = vdwg.mxu0
      %v723 = vmax.f32 %v717, 0.0
      %v724 = vmax.f32 %v720, 0.0
      %v725 = vpack.c.bf16 %v724, %v723
      %v726 = vld [vmem:[%s4] sm:$0xf]
      %v727 = vld [vmem:[%s4 + $0x4] sm:$0xf]
      %v728 = vld [vmem:[%s4 + $0x8] sm:$0xf]
      %v729 = vld [vmem:[%s4 + $0xc] sm:$0xf]
      %v730 = vld [vmem:[%s4 + $0x10] sm:$0xf]
      %v731 = vld [vmem:[%s4 + $0x14] sm:$0xf]
      %v732 = vld [vmem:[%s4 + $0x18] sm:$0xf]
      %v733 = vld [vmem:[%s4 + $0x1c] sm:$0xf]
      %v734 = vld [vmem:[%s4 + $0x20] sm:$0xf]
      %v735 = vld [vmem:[%s4 + $0x24] sm:$0xf]
      %v736 = vld [vmem:[%s4 + $0x28] sm:$0xf]
      %v737 = vld [vmem:[%s4 + $0x2c] sm:$0xf]
      %v738 = vld [vmem:[%s4 + $0x30] sm:$0xf]
      %v739 = vld [vmem:[%s4 + $0x34] sm:$0xf]
      %v740 = vld [vmem:[%s4 + $0x38] sm:$0xf]
      %v741 = vld [vmem:[%s4 + $0x3c] sm:$0xf]
      %v742 = vlaneseq
      %v743 = vshrl.u32 %v742, 7
      %v744 = vsub.s32 5, %v743
      %v745 = vrot.slane %v293, %v744
      %v762 = vunpack.c.l.b16 %v726
      %v763 = vunpack.c.l.b16 %v727
      %v764 = vunpack.c.l.b16 %v728
      %v765 = vunpack.c.l.b16 %v729
      %v766 = vunpack.c.l.b16 %v730
      %v767 = vunpack.c.l.b16 %v731
      %v768 = vunpack.c.l.b16 %v732
      %v769 = vunpack.c.l.b16 %v733
      %v770 = vunpack.c.l.b16 %v734
      %v771 = vunpack.c.l.b16 %v735
      %v772 = vunpack.c.l.b16 %v736
      %v773 = vunpack.c.l.b16 %v737
      %v774 = vunpack.c.l.b16 %v738
      %v775 = vunpack.c.l.b16 %v739
      %v776 = vunpack.c.l.b16 %v740
      %v777 = vunpack.c.l.b16 %v741
      %v778 = vpack.c.b16 %v763, %v762
      %v779 = vpack.c.b16 %v765, %v764
      %v780 = vpack.c.b16 %v767, %v766
      %v781 = vpack.c.b16 %v769, %v768
      %v782 = vpack.c.b16 %v771, %v770
      %v783 = vpack.c.b16 %v773, %v772
      %v784 = vpack.c.b16 %v775, %v774
      %v785 = vpack.c.b16 %v777, %v776
      %794 = vmatprep.subr.bf16.mxu0 0
      %795 = vmatpush1.bf16.msra.mxu0 %v778
      %796 = vmatprep.subr.bf16.mxu0 0
      %797 = vmatpush1.bf16.msra.mxu0 %v779
      %798 = vmatprep.subr.bf16.mxu0 0
      %799 = vmatpush1.bf16.msra.mxu0 %v780
      %800 = vmatprep.subr.bf16.mxu0 0
      %801 = vmatpush1.bf16.msra.mxu0 %v781
      %802 = vmatprep.subr.bf16.mxu0 0
      %803 = vmatpush1.bf16.msra.mxu0 %v782
      %804 = vmatprep.subr.bf16.mxu0 0
      %805 = vmatpush1.bf16.msra.mxu0 %v783
      %806 = vmatprep.subr.bf16.mxu0 0
      %807 = vmatpush1.bf16.msra.mxu0 %v784
      %808 = vmatprep.subr.bf16.mxu0 0
      %809 = vmatpush1.bf16.msra.mxu0 %v785
      %810 = vmatprep.subr.bf16.mxu0 0
      %811 = vmatpush1.bf16.msra.mxu0 0
      %812 = vmatprep.subr.bf16.mxu0 0
      %813 = vmatpush1.bf16.msra.mxu0 0
      %814 = vmatprep.subr.bf16.mxu0 0
      %815 = vmatpush1.bf16.msra.mxu0 0
      %816 = vmatprep.subr.bf16.mxu0 0
      %817 = vmatpush1.bf16.msra.mxu0 0
      %818 = vmatprep.subr.bf16.mxu0 0
      %819 = vmatpush1.bf16.msra.mxu0 0
      %820 = vmatprep.subr.bf16.mxu0 0
      %821 = vmatpush1.bf16.msra.mxu0 0
      %822 = vmatprep.subr.bf16.mxu0 0
      %823 = vmatpush1.bf16.msra.mxu0 0
      %824 = vmatprep.subr.bf16.mxu0 0
      %825 = vmatpush1.bf16.msra.mxu0 0
      %826 = vmatprep.mubr.bf16.mxu0 0
      %827 = vmatmul.mubr.bf16.gmra.mrb[0].mxu0 %v725
      %v828 = vpop.f32.mrb[0].mxu0
      %v829 = vadd.f32 %v745, %v828
      %v830 = vpop.f32.mrb[0].mxu0
      %v831 = vpop.f32.mrb[0].mxu0
      %v832 = vadd.f32 %v745, %v831
      %v833 = vpop.f32.mrb[0].mxu0
      %834 = vdwg.mxu0
      %v835 = vadd.f32 %v656, %v829
      %v836 = vadd.f32 %v657, %v832
      %v837 = vsel %vm315, %v835, 0.0
      %838 = vadd.xlane.f32.xlu0 %v837
      %v839 = vpop.xlane.xlu0 %838
      %v840 = vsel %vm315, %v836, 0.0
      %841 = vadd.xlane.f32.xlu0 %v840
      %v842 = vpop.xlane.xlu0 %841
      %v843 = vmul.f32 %v839, %v625
      %v844 = vmul.f32 %v842, %v625
      %v845 = vsub.f32 %v835, %v843
      %v846 = vsub.f32 %v836, %v844
      %v847 = vmul.f32 %v845, %v845
      %v848 = vmul.f32 %v846, %v846
      %v849 = vsel %vm315, %v847, 0.0
      %850 = vadd.xlane.f32.xlu0 %v849
      %v851 = vpop.xlane.xlu0 %850
      %v852 = vsel %vm315, %v848, 0.0
      %853 = vadd.xlane.f32.xlu0 %v852
      %v854 = vpop.xlane.xlu0 %853
      %v855 = vmul.f32 %v851, %v625
      %v856 = vmul.f32 %v854, %v625
      %v857 = vadd.f32 %v855, 1e-05
      %v858 = vadd.f32 %v856, 1e-05
      %v859 = vrsqrt.pop %v857
      %v860 = vrsqrt.pop %v858
      %v861 = vmul.f32 %v845, %v859
      %v862 = vmul.f32 %v846, %v860
      %v863 = vlaneseq
      %v864 = vshrl.u32 %v863, 7
      %v865 = vsub.s32 3, %v864
      %v866 = vrot.slane %v293, %v865
      %v867 = vmul.f32 %v861, %v866
      %v868 = vmul.f32 %v862, %v866
      %v869 = vlaneseq
      %v870 = vshrl.u32 %v869, 7
      %v871 = vsub.s32 4, %v870
      %v872 = vrot.slane %v293, %v871
      %v873 = vadd.f32 %v867, %v872
      %v874 = vadd.f32 %v868, %v872
      %s875 = scalar_lea.vmem %s5, 2
      %v876 = vld [vmem:[%s875] sm:$0x3]
      %s877 = scalar_lea.vmem %s6, 8
      %v878 = vld [vmem:[%s877] sm:$0x3f]
      %v879 = vpack.c.bf16 %v874, %v873
      %s880 = scalar_lea.vmem %s2, 16
      %v881 = vld [vmem:[%s880] sm:$0xf]
      %v882 = vld [vmem:[%s880 + $0x4] sm:$0xf]
      %v883 = vld [vmem:[%s880 + $0x8] sm:$0xf]
      %v884 = vld [vmem:[%s880 + $0xc] sm:$0xf]
      %v885 = vlaneseq
      %v886 = vshrl.u32 %v885, 7
      %v887 = vsub.s32 0, %v886
      %v888 = vrot.slane %v876, %v887
      %v893 = vunpack.c.l.b16 %v881
      %v894 = vunpack.c.l.b16 %v882
      %v895 = vunpack.c.l.b16 %v883
      %v896 = vunpack.c.l.b16 %v884
      %v897 = vpack.c.b16 %v894, %v893
      %v898 = vpack.c.b16 %v896, %v895
      %v902 = vsel %vm315, %v879, 0
      %904 = vmatprep.subr.bf16.mxu0 0
      %905 = vmatpush1.bf16.msra.mxu0 %v897
      %906 = vmatprep.subr.bf16.mxu0 0
      %907 = vmatpush1.bf16.msra.mxu0 %v898
      %908 = vmatprep.subr.bf16.mxu0 0
      %909 = vmatpush1.bf16.msra.mxu0 0
      %910 = vmatprep.subr.bf16.mxu0 0
      %911 = vmatpush1.bf16.msra.mxu0 0
      %912 = vmatprep.subr.bf16.mxu0 0
      %913 = vmatpush1.bf16.msra.mxu0 0
      %914 = vmatprep.subr.bf16.mxu0 0
      %915 = vmatpush1.bf16.msra.mxu0 0
      %916 = vmatprep.subr.bf16.mxu0 0
      %917 = vmatpush1.bf16.msra.mxu0 0
      %918 = vmatprep.subr.bf16.mxu0 0
      %919 = vmatpush1.bf16.msra.mxu0 0
      %920 = vmatprep.subr.bf16.mxu0 0
      %921 = vmatpush1.bf16.msra.mxu0 0
      %922 = vmatprep.subr.bf16.mxu0 0
      %923 = vmatpush1.bf16.msra.mxu0 0
      %924 = vmatprep.subr.bf16.mxu0 0
      %925 = vmatpush1.bf16.msra.mxu0 0
      %926 = vmatprep.subr.bf16.mxu0 0
      %927 = vmatpush1.bf16.msra.mxu0 0
      %928 = vmatprep.subr.bf16.mxu0 0
      %929 = vmatpush1.bf16.msra.mxu0 0
      %930 = vmatprep.subr.bf16.mxu0 0
      %931 = vmatpush1.bf16.msra.mxu0 0
      %932 = vmatprep.subr.bf16.mxu0 0
      %933 = vmatpush1.bf16.msra.mxu0 0
      %934 = vmatprep.subr.bf16.mxu0 0
      %935 = vmatpush1.bf16.msra.mxu0 0
      %936 = vmatprep.mubr.bf16.mxu0 0
      %937 = vmatmul.mubr.bf16.gmra.mrb[0].mxu0 %v902
      %v938 = vpop.f32.mrb[0].mxu0
      %v939 = vadd.f32 %v888, %v938
      %v940 = vpop.f32.mrb[0].mxu0
      %v941 = vpop.f32.mrb[0].mxu0
      %v942 = vadd.f32 %v888, %v941
      %v943 = vpop.f32.mrb[0].mxu0
      %944 = vdwg.mxu0
      %v945 = vpack.c.bf16 %v942, %v939
      %947 = vrot.lane.b32.xlu0 %v945, 96
      %v948 = vpop.permute.xlu0 %947
      %v950 = vsel %vm364, %v945, 0
      %v953 = vsel %vm364, %v948, 0
      %955 = vmatprep.subr.bf16.mxu0 0
      %956 = vmatpush1.bf16.xpose.msra.mxu0 %v953
      %957 = vmatprep.subr.bf16.mxu0 0
      %958 = vmatpush1.bf16.xpose.msra.mxu0 0
      %959 = vmatprep.subr.bf16.mxu0 0
      %960 = vmatpush1.bf16.xpose.msra.mxu0 0
      %961 = vmatprep.subr.bf16.mxu0 0
      %962 = vmatpush1.bf16.xpose.msra.mxu0 0
      %963 = vmatprep.subr.bf16.mxu0 0
      %964 = vmatpush1.bf16.xpose.msra.mxu0 0
      %965 = vmatprep.subr.bf16.mxu0 0
      %966 = vmatpush1.bf16.xpose.msra.mxu0 0
      %967 = vmatprep.subr.bf16.mxu0 0
      %968 = vmatpush1.bf16.xpose.msra.mxu0 0
      %969 = vmatprep.subr.bf16.mxu0 0
      %970 = vmatpush1.bf16.xpose.msra.mxu0 0
      %971 = vmatprep.subr.bf16.mxu0 0
      %972 = vmatpush1.bf16.xpose.msra.mxu0 0
      %973 = vmatprep.subr.bf16.mxu0 0
      %974 = vmatpush1.bf16.xpose.msra.mxu0 0
      %975 = vmatprep.subr.bf16.mxu0 0
      %976 = vmatpush1.bf16.xpose.msra.mxu0 0
      %977 = vmatprep.subr.bf16.mxu0 0
      %978 = vmatpush1.bf16.xpose.msra.mxu0 0
      %979 = vmatprep.subr.bf16.mxu0 0
      %980 = vmatpush1.bf16.xpose.msra.mxu0 0
      %981 = vmatprep.subr.bf16.mxu0 0
      %982 = vmatpush1.bf16.xpose.msra.mxu0 0
      %983 = vmatprep.subr.bf16.mxu0 0
      %984 = vmatpush1.bf16.xpose.msra.mxu0 0
      %985 = vmatprep.subr.bf16.mxu0 0
      %986 = vmatpush1.bf16.xpose.msra.mxu0 0
      %987 = vmatprep.mubr.bf16.mxu0 0
      %988 = vmatmul.mubr.bf16.gmra.mrb[0].mxu0 %v950
      %v989 = vpop.f32.mrb[0].mxu0
      %v990 = vadd.f32 0.0, %v989
      %v991 = vpop.f32.mrb[0].mxu0
      %v992 = vpop.f32.mrb[0].mxu0
      %v993 = vadd.f32 0.0, %v992
      %v994 = vpop.f32.mrb[0].mxu0
      %995 = vdwg.mxu0
      %v996 = vmul.f32 %v990, 0.25
      %v997 = vmul.f32 %v993, 0.25
      %v998 = vadd.f32 %v996, %v291
      %v999 = vadd.f32 %v997, %v291
      %v1000 = vsel %vm364, %v998, -inf
      %1001 = vmax.xlane.f32.xlu0 %v1000
      %v1002 = vpop.xlane.xlu0 %1001
      %v1003 = vsel %vm364, %v999, -inf
      %1004 = vmax.xlane.f32.xlu0 %v1003
      %v1005 = vpop.xlane.xlu0 %1004
      %v1006 = vsub.f32 %v998, %v1002
      %v1007 = vsub.f32 %v999, %v1005
      %v1008 = vmul.f32 %v1006, 1.442695
      %v1009 = vpow.pop %v1008
      %v1010 = vmul.f32 %v1007, 1.442695
      %v1011 = vpow.pop %v1010
      %v1012 = vsel %vm364, %v1009, 0.0
      %1013 = vadd.xlane.f32.xlu0 %v1012
      %v1014 = vpop.xlane.xlu0 %1013
      %v1015 = vsel %vm364, %v1011, 0.0
      %1016 = vadd.xlane.f32.xlu0 %v1015
      %v1017 = vpop.xlane.xlu0 %1016
      %v1018 = vrcp.pop %v1014
      %v1019 = vrcp.pop %v1017
      %v1020 = vmul.f32 %v1009, %v1018
      %v1021 = vmul.f32 %v1011, %v1019
      %v1022 = vpack.c.bf16 %v1021, %v1020
      %1023 = vrot.lane.b32.xlu0 %v945, 112
      %v1024 = vpop.permute.xlu0 %1023
      %1025 = vrot.lane.b32.xlu0 %v945, 80
      %v1026 = vpop.permute.xlu0 %1025
      %v1028 = vsel %vm364, %v1024, 0
      %v1031 = vsel %vm364, %v1026, 0
      %1033 = vmatprep.subr.bf16.mxu0 0
      %1034 = vmatpush1.bf16.xpose.msra.mxu0 %v1031
      %1035 = vmatprep.subr.bf16.mxu0 0
      %1036 = vmatpush1.bf16.xpose.msra.mxu0 0
      %1037 = vmatprep.subr.bf16.mxu0 0
      %1038 = vmatpush1.bf16.xpose.msra.mxu0 0
      %1039 = vmatprep.subr.bf16.mxu0 0
      %1040 = vmatpush1.bf16.xpose.msra.mxu0 0
      %1041 = vmatprep.subr.bf16.mxu0 0
      %1042 = vmatpush1.bf16.xpose.msra.mxu0 0
      %1043 = vmatprep.subr.bf16.mxu0 0
      %1044 = vmatpush1.bf16.xpose.msra.mxu0 0
      %1045 = vmatprep.subr.bf16.mxu0 0
      %1046 = vmatpush1.bf16.xpose.msra.mxu0 0
      %1047 = vmatprep.subr.bf16.mxu0 0
      %1048 = vmatpush1.bf16.xpose.msra.mxu0 0
      %1049 = vmatprep.subr.bf16.mxu0 0
      %1050 = vmatpush1.bf16.xpose.msra.mxu0 0
      %1051 = vmatprep.subr.bf16.mxu0 0
      %1052 = vmatpush1.bf16.xpose.msra.mxu0 0
      %1053 = vmatprep.subr.bf16.mxu0 0
      %1054 = vmatpush1.bf16.xpose.msra.mxu0 0
      %1055 = vmatprep.subr.bf16.mxu0 0
      %1056 = vmatpush1.bf16.xpose.msra.mxu0 0
      %1057 = vmatprep.subr.bf16.mxu0 0
      %1058 = vmatpush1.bf16.xpose.msra.mxu0 0
      %1059 = vmatprep.subr.bf16.mxu0 0
      %1060 = vmatpush1.bf16.xpose.msra.mxu0 0
      %1061 = vmatprep.subr.bf16.mxu0 0
      %1062 = vmatpush1.bf16.xpose.msra.mxu0 0
      %1063 = vmatprep.subr.bf16.mxu0 0
      %1064 = vmatpush1.bf16.xpose.msra.mxu0 0
      %1065 = vmatprep.mubr.bf16.mxu0 0
      %1066 = vmatmul.mubr.bf16.gmra.mrb[0].mxu0 %v1028
      %v1067 = vpop.f32.mrb[0].mxu0
      %v1068 = vadd.f32 0.0, %v1067
      %v1069 = vpop.f32.mrb[0].mxu0
      %v1070 = vpop.f32.mrb[0].mxu0
      %v1071 = vadd.f32 0.0, %v1070
      %v1072 = vpop.f32.mrb[0].mxu0
      %1073 = vdwg.mxu0
      %v1074 = vmul.f32 %v1068, 0.25
      %v1075 = vmul.f32 %v1071, 0.25
      %v1076 = vadd.f32 %v1074, %v291
      %v1077 = vadd.f32 %v1075, %v291
      %v1078 = vsel %vm364, %v1076, -inf
      %1079 = vmax.xlane.f32.xlu0 %v1078
      %v1080 = vpop.xlane.xlu0 %1079
      %v1081 = vsel %vm364, %v1077, -inf
      %1082 = vmax.xlane.f32.xlu0 %v1081
      %v1083 = vpop.xlane.xlu0 %1082
      %v1084 = vsub.f32 %v1076, %v1080
      %v1085 = vsub.f32 %v1077, %v1083
      %v1086 = vmul.f32 %v1084, 1.442695
      %v1087 = vpow.pop %v1086
      %v1088 = vmul.f32 %v1085, 1.442695
      %v1089 = vpow.pop %v1088
      %v1090 = vsel %vm364, %v1087, 0.0
      %1091 = vadd.xlane.f32.xlu0 %v1090
      %v1092 = vpop.xlane.xlu0 %1091
      %v1093 = vsel %vm364, %v1089, 0.0
      %1094 = vadd.xlane.f32.xlu0 %v1093
      %v1095 = vpop.xlane.xlu0 %1094
      %v1096 = vrcp.pop %v1092
      %v1097 = vrcp.pop %v1095
      %v1098 = vmul.f32 %v1087, %v1096
      %v1099 = vmul.f32 %v1089, %v1097
      %v1100 = vpack.c.bf16 %v1099, %v1098
      %1101 = vrot.lane.b32.xlu0 %v945, 32
      %v1102 = vpop.permute.xlu0 %1101
      %v1105 = vsel %vm364, %v1100, 0
      %1107 = vmatprep.subr.bf16.mxu0 0
      %1108 = vmatpush1.bf16.msra.mxu0 %v1102
      %1109 = vmatprep.subr.bf16.mxu0 0
      %1110 = vmatpush1.bf16.msra.mxu0 0
      %1111 = vmatprep.subr.bf16.mxu0 0
      %1112 = vmatpush1.bf16.msra.mxu0 0
      %1113 = vmatprep.subr.bf16.mxu0 0
      %1114 = vmatpush1.bf16.msra.mxu0 0
      %1115 = vmatprep.subr.bf16.mxu0 0
      %1116 = vmatpush1.bf16.msra.mxu0 0
      %1117 = vmatprep.subr.bf16.mxu0 0
      %1118 = vmatpush1.bf16.msra.mxu0 0
      %1119 = vmatprep.subr.bf16.mxu0 0
      %1120 = vmatpush1.bf16.msra.mxu0 0
      %1121 = vmatprep.subr.bf16.mxu0 0
      %1122 = vmatpush1.bf16.msra.mxu0 0
      %1123 = vmatprep.subr.bf16.mxu0 0
      %1124 = vmatpush1.bf16.msra.mxu0 0
      %1125 = vmatprep.subr.bf16.mxu0 0
      %1126 = vmatpush1.bf16.msra.mxu0 0
      %1127 = vmatprep.subr.bf16.mxu0 0
      %1128 = vmatpush1.bf16.msra.mxu0 0
      %1129 = vmatprep.subr.bf16.mxu0 0
      %1130 = vmatpush1.bf16.msra.mxu0 0
      %1131 = vmatprep.subr.bf16.mxu0 0
      %1132 = vmatpush1.bf16.msra.mxu0 0
      %1133 = vmatprep.subr.bf16.mxu0 0
      %1134 = vmatpush1.bf16.msra.mxu0 0
      %1135 = vmatprep.subr.bf16.mxu0 0
      %1136 = vmatpush1.bf16.msra.mxu0 0
      %1137 = vmatprep.subr.bf16.mxu0 0
      %1138 = vmatpush1.bf16.msra.mxu0 0
      %1139 = vmatprep.mubr.bf16.mxu0 0
      %1140 = vmatmul.mubr.bf16.gmra.mrb[0].mxu0 %v1105
      %v1141 = vpop.f32.mrb[0].mxu0
      %v1142 = vadd.f32 0.0, %v1141
      %v1143 = vpop.f32.mrb[0].mxu0
      %v1144 = vpop.f32.mrb[0].mxu0
      %v1145 = vadd.f32 0.0, %v1144
      %v1146 = vpop.f32.mrb[0].mxu0
      %1147 = vdwg.mxu0
      %1148 = vrot.lane.b32.xlu0 %v945, 64
      %v1149 = vpop.permute.xlu0 %1148
      %v1152 = vsel %vm364, %v1022, 0
      %1154 = vmatprep.subr.bf16.mxu0 0
      %1155 = vmatpush1.bf16.msra.mxu0 %v1149
      %1156 = vmatprep.subr.bf16.mxu0 0
      %1157 = vmatpush1.bf16.msra.mxu0 0
      %1158 = vmatprep.subr.bf16.mxu0 0
      %1159 = vmatpush1.bf16.msra.mxu0 0
      %1160 = vmatprep.subr.bf16.mxu0 0
      %1161 = vmatpush1.bf16.msra.mxu0 0
      %1162 = vmatprep.subr.bf16.mxu0 0
      %1163 = vmatpush1.bf16.msra.mxu0 0
      %1164 = vmatprep.subr.bf16.mxu0 0
      %1165 = vmatpush1.bf16.msra.mxu0 0
      %1166 = vmatprep.subr.bf16.mxu0 0
      %1167 = vmatpush1.bf16.msra.mxu0 0
      %1168 = vmatprep.subr.bf16.mxu0 0
      %1169 = vmatpush1.bf16.msra.mxu0 0
      %1170 = vmatprep.subr.bf16.mxu0 0
      %1171 = vmatpush1.bf16.msra.mxu0 0
      %1172 = vmatprep.subr.bf16.mxu0 0
      %1173 = vmatpush1.bf16.msra.mxu0 0
      %1174 = vmatprep.subr.bf16.mxu0 0
      %1175 = vmatpush1.bf16.msra.mxu0 0
      %1176 = vmatprep.subr.bf16.mxu0 0
      %1177 = vmatpush1.bf16.msra.mxu0 0
      %1178 = vmatprep.subr.bf16.mxu0 0
      %1179 = vmatpush1.bf16.msra.mxu0 0
      %1180 = vmatprep.subr.bf16.mxu0 0
      %1181 = vmatpush1.bf16.msra.mxu0 0
      %1182 = vmatprep.subr.bf16.mxu0 0
      %1183 = vmatpush1.bf16.msra.mxu0 0
      %1184 = vmatprep.subr.bf16.mxu0 0
      %1185 = vmatpush1.bf16.msra.mxu0 0
      %1186 = vmatprep.mubr.bf16.mxu0 0
      %1187 = vmatmul.mubr.bf16.gmra.mrb[0].mxu0 %v1152
      %v1188 = vpop.f32.mrb[0].mxu0
      %v1189 = vadd.f32 %v1142, %v1188
      %v1190 = vpop.f32.mrb[0].mxu0
      %v1191 = vpop.f32.mrb[0].mxu0
      %v1192 = vadd.f32 %v1145, %v1191
      %v1193 = vpop.f32.mrb[0].mxu0
      %1194 = vdwg.mxu0
      %v1195 = vlaneseq
      %v1196 = vshrl.u32 %v1195, 7
      %v1197 = vsub.s32 0, %v1196
      %v1198 = vrot.slane %v878, %v1197
      %v1199 = vadd.f32 %v1189, %v1198
      %v1200 = vadd.f32 %v1192, %v1198
      %v1201 = vadd.f32 %v873, %v1199
      %v1202 = vadd.f32 %v874, %v1200
      %v1203 = vsel %vm315, %v1201, 0.0
      %1204 = vadd.xlane.f32.xlu0 %v1203
      %v1205 = vpop.xlane.xlu0 %1204
      %v1206 = vsel %vm315, %v1202, 0.0
      %1207 = vadd.xlane.f32.xlu0 %v1206
      %v1208 = vpop.xlane.xlu0 %1207
      %v1209 = vmul.f32 %v1205, %v625
      %v1210 = vmul.f32 %v1208, %v625
      %v1211 = vsub.f32 %v1201, %v1209
      %v1212 = vsub.f32 %v1202, %v1210
      %v1213 = vmul.f32 %v1211, %v1211
      %v1214 = vmul.f32 %v1212, %v1212
      %v1215 = vsel %vm315, %v1213, 0.0
      %1216 = vadd.xlane.f32.xlu0 %v1215
      %v1217 = vpop.xlane.xlu0 %1216
      %v1218 = vsel %vm315, %v1214, 0.0
      %1219 = vadd.xlane.f32.xlu0 %v1218
      %v1220 = vpop.xlane.xlu0 %1219
      %v1221 = vmul.f32 %v1217, %v625
      %v1222 = vmul.f32 %v1220, %v625
      %v1223 = vadd.f32 %v1221, 1e-05
      %v1224 = vadd.f32 %v1222, 1e-05
      %v1225 = vrsqrt.pop %v1223
      %v1226 = vrsqrt.pop %v1224
      %v1227 = vmul.f32 %v1211, %v1225
      %v1228 = vmul.f32 %v1212, %v1226
      %v1229 = vlaneseq
      %v1230 = vshrl.u32 %v1229, 7
      %v1231 = vsub.s32 1, %v1230
      %v1232 = vrot.slane %v878, %v1231
      %v1233 = vmul.f32 %v1227, %v1232
      %v1234 = vmul.f32 %v1228, %v1232
      %v1235 = vlaneseq
      %v1236 = vshrl.u32 %v1235, 7
      %v1237 = vsub.s32 2, %v1236
      %v1238 = vrot.slane %v878, %v1237
      %v1239 = vadd.f32 %v1233, %v1238
      %v1240 = vadd.f32 %v1234, %v1238
      %v1241 = vpack.c.bf16 %v1240, %v1239
      %s1242 = scalar_lea.vmem %s3, 16
      %v1243 = vld [vmem:[%s1242] sm:$0xf]
      %v1244 = vld [vmem:[%s1242 + $0x4] sm:$0xf]
      %v1245 = vld [vmem:[%s1242 + $0x8] sm:$0xf]
      %v1246 = vld [vmem:[%s1242 + $0xc] sm:$0xf]
      %v1247 = vlaneseq
      %v1248 = vshrl.u32 %v1247, 7
      %v1249 = vsub.s32 1, %v1248
      %v1250 = vrot.slane %v876, %v1249
      %v1255 = vunpack.c.l.b16 %v1243
      %v1256 = vunpack.c.l.b16 %v1244
      %v1257 = vunpack.c.l.b16 %v1245
      %v1258 = vunpack.c.l.b16 %v1246
      %v1259 = vpack.c.b16 %v1256, %v1255
      %v1260 = vpack.c.b16 %v1258, %v1257
      %v1264 = vsel %vm315, %v1241, 0
      %1266 = vmatprep.subr.bf16.mxu0 0
      %1267 = vmatpush1.bf16.msra.mxu0 %v1259
      %1268 = vmatprep.subr.bf16.mxu0 0
      %1269 = vmatpush1.bf16.msra.mxu0 %v1260
      %1270 = vmatprep.subr.bf16.mxu0 0
      %1271 = vmatpush1.bf16.msra.mxu0 0
      %1272 = vmatprep.subr.bf16.mxu0 0
      %1273 = vmatpush1.bf16.msra.mxu0 0
      %1274 = vmatprep.subr.bf16.mxu0 0
      %1275 = vmatpush1.bf16.msra.mxu0 0
      %1276 = vmatprep.subr.bf16.mxu0 0
      %1277 = vmatpush1.bf16.msra.mxu0 0
      %1278 = vmatprep.subr.bf16.mxu0 0
      %1279 = vmatpush1.bf16.msra.mxu0 0
      %1280 = vmatprep.subr.bf16.mxu0 0
      %1281 = vmatpush1.bf16.msra.mxu0 0
      %1282 = vmatprep.subr.bf16.mxu0 0
      %1283 = vmatpush1.bf16.msra.mxu0 0
      %1284 = vmatprep.subr.bf16.mxu0 0
      %1285 = vmatpush1.bf16.msra.mxu0 0
      %1286 = vmatprep.subr.bf16.mxu0 0
      %1287 = vmatpush1.bf16.msra.mxu0 0
      %1288 = vmatprep.subr.bf16.mxu0 0
      %1289 = vmatpush1.bf16.msra.mxu0 0
      %1290 = vmatprep.subr.bf16.mxu0 0
      %1291 = vmatpush1.bf16.msra.mxu0 0
      %1292 = vmatprep.subr.bf16.mxu0 0
      %1293 = vmatpush1.bf16.msra.mxu0 0
      %1294 = vmatprep.subr.bf16.mxu0 0
      %1295 = vmatpush1.bf16.msra.mxu0 0
      %1296 = vmatprep.subr.bf16.mxu0 0
      %1297 = vmatpush1.bf16.msra.mxu0 0
      %1298 = vmatprep.mubr.bf16.mxu0 0
      %1299 = vmatmul.mubr.bf16.gmra.mrb[0].mxu0 %v1264
      %v1300 = vpop.f32.mrb[0].mxu0
      %v1301 = vadd.f32 %v1250, %v1300
      %v1302 = vpop.f32.mrb[0].mxu0
      %v1303 = vpop.f32.mrb[0].mxu0
      %v1304 = vadd.f32 %v1250, %v1303
      %v1305 = vpop.f32.mrb[0].mxu0
      %1306 = vdwg.mxu0
      %v1307 = vmax.f32 %v1301, 0.0
      %v1308 = vmax.f32 %v1304, 0.0
      %v1309 = vpack.c.bf16 %v1308, %v1307
      %s1310 = scalar_lea.vmem %s4, 64
      %v1311 = vld [vmem:[%s1310] sm:$0xf]
      %v1312 = vld [vmem:[%s1310 + $0x4] sm:$0xf]
      %v1313 = vld [vmem:[%s1310 + $0x8] sm:$0xf]
      %v1314 = vld [vmem:[%s1310 + $0xc] sm:$0xf]
      %v1315 = vld [vmem:[%s1310 + $0x10] sm:$0xf]
      %v1316 = vld [vmem:[%s1310 + $0x14] sm:$0xf]
      %v1317 = vld [vmem:[%s1310 + $0x18] sm:$0xf]
      %v1318 = vld [vmem:[%s1310 + $0x1c] sm:$0xf]
      %v1319 = vld [vmem:[%s1310 + $0x20] sm:$0xf]
      %v1320 = vld [vmem:[%s1310 + $0x24] sm:$0xf]
      %v1321 = vld [vmem:[%s1310 + $0x28] sm:$0xf]
      %v1322 = vld [vmem:[%s1310 + $0x2c] sm:$0xf]
      %v1323 = vld [vmem:[%s1310 + $0x30] sm:$0xf]
      %v1324 = vld [vmem:[%s1310 + $0x34] sm:$0xf]
      %v1325 = vld [vmem:[%s1310 + $0x38] sm:$0xf]
      %v1326 = vld [vmem:[%s1310 + $0x3c] sm:$0xf]
      %v1327 = vlaneseq
      %v1328 = vshrl.u32 %v1327, 7
      %v1329 = vsub.s32 5, %v1328
      %v1330 = vrot.slane %v878, %v1329
      %v1347 = vunpack.c.l.b16 %v1311
      %v1348 = vunpack.c.l.b16 %v1312
      %v1349 = vunpack.c.l.b16 %v1313
      %v1350 = vunpack.c.l.b16 %v1314
      %v1351 = vunpack.c.l.b16 %v1315
      %v1352 = vunpack.c.l.b16 %v1316
      %v1353 = vunpack.c.l.b16 %v1317
      %v1354 = vunpack.c.l.b16 %v1318
      %v1355 = vunpack.c.l.b16 %v1319
      %v1356 = vunpack.c.l.b16 %v1320
      %v1357 = vunpack.c.l.b16 %v1321
      %v1358 = vunpack.c.l.b16 %v1322
      %v1359 = vunpack.c.l.b16 %v1323
      %v1360 = vunpack.c.l.b16 %v1324
      %v1361 = vunpack.c.l.b16 %v1325
      %v1362 = vunpack.c.l.b16 %v1326
      %v1363 = vpack.c.b16 %v1348, %v1347
      %v1364 = vpack.c.b16 %v1350, %v1349
      %v1365 = vpack.c.b16 %v1352, %v1351
      %v1366 = vpack.c.b16 %v1354, %v1353
      %v1367 = vpack.c.b16 %v1356, %v1355
      %v1368 = vpack.c.b16 %v1358, %v1357
      %v1369 = vpack.c.b16 %v1360, %v1359
      %v1370 = vpack.c.b16 %v1362, %v1361
      %1379 = vmatprep.subr.bf16.mxu0 0
      %1380 = vmatpush1.bf16.msra.mxu0 %v1363
      %1381 = vmatprep.subr.bf16.mxu0 0
      %1382 = vmatpush1.bf16.msra.mxu0 %v1364
      %1383 = vmatprep.subr.bf16.mxu0 0
      %1384 = vmatpush1.bf16.msra.mxu0 %v1365
      %1385 = vmatprep.subr.bf16.mxu0 0
      %1386 = vmatpush1.bf16.msra.mxu0 %v1366
      %1387 = vmatprep.subr.bf16.mxu0 0
      %1388 = vmatpush1.bf16.msra.mxu0 %v1367
      %1389 = vmatprep.subr.bf16.mxu0 0
      %1390 = vmatpush1.bf16.msra.mxu0 %v1368
      %1391 = vmatprep.subr.bf16.mxu0 0
      %1392 = vmatpush1.bf16.msra.mxu0 %v1369
      %1393 = vmatprep.subr.bf16.mxu0 0
      %1394 = vmatpush1.bf16.msra.mxu0 %v1370
      %1395 = vmatprep.subr.bf16.mxu0 0
      %1396 = vmatpush1.bf16.msra.mxu0 0
      %1397 = vmatprep.subr.bf16.mxu0 0
      %1398 = vmatpush1.bf16.msra.mxu0 0
      %1399 = vmatprep.subr.bf16.mxu0 0
      %1400 = vmatpush1.bf16.msra.mxu0 0
      %1401 = vmatprep.subr.bf16.mxu0 0
      %1402 = vmatpush1.bf16.msra.mxu0 0
      %1403 = vmatprep.subr.bf16.mxu0 0
      %1404 = vmatpush1.bf16.msra.mxu0 0
      %1405 = vmatprep.subr.bf16.mxu0 0
      %1406 = vmatpush1.bf16.msra.mxu0 0
      %1407 = vmatprep.subr.bf16.mxu0 0
      %1408 = vmatpush1.bf16.msra.mxu0 0
      %1409 = vmatprep.subr.bf16.mxu0 0
      %1410 = vmatpush1.bf16.msra.mxu0 0
      %1411 = vmatprep.mubr.bf16.mxu0 0
      %1412 = vmatmul.mubr.bf16.gmra.mrb[0].mxu0 %v1309
      %v1413 = vpop.f32.mrb[0].mxu0
      %v1414 = vadd.f32 %v1330, %v1413
      %v1415 = vpop.f32.mrb[0].mxu0
      %v1416 = vpop.f32.mrb[0].mxu0
      %v1417 = vadd.f32 %v1330, %v1416
      %v1418 = vpop.f32.mrb[0].mxu0
      %1419 = vdwg.mxu0
      %v1420 = vadd.f32 %v1239, %v1414
      %v1421 = vadd.f32 %v1240, %v1417
      %v1422 = vsel %vm315, %v1420, 0.0
      %1423 = vadd.xlane.f32.xlu0 %v1422
      %v1424 = vpop.xlane.xlu0 %1423
      %v1425 = vsel %vm315, %v1421, 0.0
      %1426 = vadd.xlane.f32.xlu0 %v1425
      %v1427 = vpop.xlane.xlu0 %1426
      %v1428 = vmul.f32 %v1424, %v625
      %v1429 = vmul.f32 %v1427, %v625
      %v1430 = vsub.f32 %v1420, %v1428
      %v1431 = vsub.f32 %v1421, %v1429
      %v1432 = vmul.f32 %v1430, %v1430
      %v1433 = vmul.f32 %v1431, %v1431
      %v1434 = vsel %vm315, %v1432, 0.0
      %1435 = vadd.xlane.f32.xlu0 %v1434
      %v1436 = vpop.xlane.xlu0 %1435
      %v1437 = vsel %vm315, %v1433, 0.0
      %1438 = vadd.xlane.f32.xlu0 %v1437
      %v1439 = vpop.xlane.xlu0 %1438
      %v1440 = vmul.f32 %v1436, %v625
      %v1441 = vmul.f32 %v1439, %v625
      %v1442 = vadd.f32 %v1440, 1e-05
      %v1443 = vadd.f32 %v1441, 1e-05
      %v1444 = vrsqrt.pop %v1442
      %v1445 = vrsqrt.pop %v1443
      %v1446 = vmul.f32 %v1430, %v1444
      %v1447 = vmul.f32 %v1431, %v1445
      %v1448 = vlaneseq
      %v1449 = vshrl.u32 %v1448, 7
      %v1450 = vsub.s32 3, %v1449
      %v1451 = vrot.slane %v878, %v1450
      %v1452 = vmul.f32 %v1446, %v1451
      %v1453 = vmul.f32 %v1447, %v1451
      %v1454 = vlaneseq
      %v1455 = vshrl.u32 %v1454, 7
      %v1456 = vsub.s32 4, %v1455
      %v1457 = vrot.slane %v878, %v1456
      %v1458 = vadd.f32 %v1452, %v1457
      %v1459 = vadd.f32 %v1453, %v1457
      %s1460 = scalar_lea.vmem %s5, 4
      %v1461 = vld [vmem:[%s1460] sm:$0x3]
      %s1462 = scalar_lea.vmem %s6, 16
      %v1463 = vld [vmem:[%s1462] sm:$0x3f]
      %v1464 = vpack.c.bf16 %v1459, %v1458
      %s1465 = scalar_lea.vmem %s2, 32
      %v1466 = vld [vmem:[%s1465] sm:$0xf]
      %v1467 = vld [vmem:[%s1465 + $0x4] sm:$0xf]
      %v1468 = vld [vmem:[%s1465 + $0x8] sm:$0xf]
      %v1469 = vld [vmem:[%s1465 + $0xc] sm:$0xf]
      %v1470 = vlaneseq
      %v1471 = vshrl.u32 %v1470, 7
      %v1472 = vsub.s32 0, %v1471
      %v1473 = vrot.slane %v1461, %v1472
      %v1478 = vunpack.c.l.b16 %v1466
      %v1479 = vunpack.c.l.b16 %v1467
      %v1480 = vunpack.c.l.b16 %v1468
      %v1481 = vunpack.c.l.b16 %v1469
      %v1482 = vpack.c.b16 %v1479, %v1478
      %v1483 = vpack.c.b16 %v1481, %v1480
      %v1487 = vsel %vm315, %v1464, 0
      %1489 = vmatprep.subr.bf16.mxu0 0
      %1490 = vmatpush1.bf16.msra.mxu0 %v1482
      %1491 = vmatprep.subr.bf16.mxu0 0
      %1492 = vmatpush1.bf16.msra.mxu0 %v1483
      %1493 = vmatprep.subr.bf16.mxu0 0
      %1494 = vmatpush1.bf16.msra.mxu0 0
      %1495 = vmatprep.subr.bf16.mxu0 0
      %1496 = vmatpush1.bf16.msra.mxu0 0
      %1497 = vmatprep.subr.bf16.mxu0 0
      %1498 = vmatpush1.bf16.msra.mxu0 0
      %1499 = vmatprep.subr.bf16.mxu0 0
      %1500 = vmatpush1.bf16.msra.mxu0 0
      %1501 = vmatprep.subr.bf16.mxu0 0
      %1502 = vmatpush1.bf16.msra.mxu0 0
      %1503 = vmatprep.subr.bf16.mxu0 0
      %1504 = vmatpush1.bf16.msra.mxu0 0
      %1505 = vmatprep.subr.bf16.mxu0 0
      %1506 = vmatpush1.bf16.msra.mxu0 0
      %1507 = vmatprep.subr.bf16.mxu0 0
      %1508 = vmatpush1.bf16.msra.mxu0 0
      %1509 = vmatprep.subr.bf16.mxu0 0
      %1510 = vmatpush1.bf16.msra.mxu0 0
      %1511 = vmatprep.subr.bf16.mxu0 0
      %1512 = vmatpush1.bf16.msra.mxu0 0
      %1513 = vmatprep.subr.bf16.mxu0 0
      %1514 = vmatpush1.bf16.msra.mxu0 0
      %1515 = vmatprep.subr.bf16.mxu0 0
      %1516 = vmatpush1.bf16.msra.mxu0 0
      %1517 = vmatprep.subr.bf16.mxu0 0
      %1518 = vmatpush1.bf16.msra.mxu0 0
      %1519 = vmatprep.subr.bf16.mxu0 0
      %1520 = vmatpush1.bf16.msra.mxu0 0
      %1521 = vmatprep.mubr.bf16.mxu0 0
      %1522 = vmatmul.mubr.bf16.gmra.mrb[0].mxu0 %v1487
      %v1523 = vpop.f32.mrb[0].mxu0
      %v1524 = vadd.f32 %v1473, %v1523
      %v1525 = vpop.f32.mrb[0].mxu0
      %v1526 = vpop.f32.mrb[0].mxu0
      %v1527 = vadd.f32 %v1473, %v1526
      %v1528 = vpop.f32.mrb[0].mxu0
      %1529 = vdwg.mxu0
      %v1530 = vpack.c.bf16 %v1527, %v1524
      %1532 = vrot.lane.b32.xlu0 %v1530, 96
      %v1533 = vpop.permute.xlu0 %1532
      %v1535 = vsel %vm364, %v1530, 0
      %v1538 = vsel %vm364, %v1533, 0
      %1540 = vmatprep.subr.bf16.mxu0 0
      %1541 = vmatpush1.bf16.xpose.msra.mxu0 %v1538
      %1542 = vmatprep.subr.bf16.mxu0 0
      %1543 = vmatpush1.bf16.xpose.msra.mxu0 0
      %1544 = vmatprep.subr.bf16.mxu0 0
      %1545 = vmatpush1.bf16.xpose.msra.mxu0 0
      %1546 = vmatprep.subr.bf16.mxu0 0
      %1547 = vmatpush1.bf16.xpose.msra.mxu0 0
      %1548 = vmatprep.subr.bf16.mxu0 0
      %1549 = vmatpush1.bf16.xpose.msra.mxu0 0
      %1550 = vmatprep.subr.bf16.mxu0 0
      %1551 = vmatpush1.bf16.xpose.msra.mxu0 0
      %1552 = vmatprep.subr.bf16.mxu0 0
      %1553 = vmatpush1.bf16.xpose.msra.mxu0 0
      %1554 = vmatprep.subr.bf16.mxu0 0
      %1555 = vmatpush1.bf16.xpose.msra.mxu0 0
      %1556 = vmatprep.subr.bf16.mxu0 0
      %1557 = vmatpush1.bf16.xpose.msra.mxu0 0
      %1558 = vmatprep.subr.bf16.mxu0 0
      %1559 = vmatpush1.bf16.xpose.msra.mxu0 0
      %1560 = vmatprep.subr.bf16.mxu0 0
      %1561 = vmatpush1.bf16.xpose.msra.mxu0 0
      %1562 = vmatprep.subr.bf16.mxu0 0
      %1563 = vmatpush1.bf16.xpose.msra.mxu0 0
      %1564 = vmatprep.subr.bf16.mxu0 0
      %1565 = vmatpush1.bf16.xpose.msra.mxu0 0
      %1566 = vmatprep.subr.bf16.mxu0 0
      %1567 = vmatpush1.bf16.xpose.msra.mxu0 0
      %1568 = vmatprep.subr.bf16.mxu0 0
      %1569 = vmatpush1.bf16.xpose.msra.mxu0 0
      %1570 = vmatprep.subr.bf16.mxu0 0
      %1571 = vmatpush1.bf16.xpose.msra.mxu0 0
      %1572 = vmatprep.mubr.bf16.mxu0 0
      %1573 = vmatmul.mubr.bf16.gmra.mrb[0].mxu0 %v1535
      %v1574 = vpop.f32.mrb[0].mxu0
      %v1575 = vadd.f32 0.0, %v1574
      %v1576 = vpop.f32.mrb[0].mxu0
      %v1577 = vpop.f32.mrb[0].mxu0
      %v1578 = vadd.f32 0.0, %v1577
      %v1579 = vpop.f32.mrb[0].mxu0
      %1580 = vdwg.mxu0
      %v1581 = vmul.f32 %v1575, 0.25
      %v1582 = vmul.f32 %v1578, 0.25
      %v1583 = vadd.f32 %v1581, %v291
      %v1584 = vadd.f32 %v1582, %v291
      %v1585 = vsel %vm364, %v1583, -inf
      %1586 = vmax.xlane.f32.xlu0 %v1585
      %v1587 = vpop.xlane.xlu0 %1586
      %v1588 = vsel %vm364, %v1584, -inf
      %1589 = vmax.xlane.f32.xlu0 %v1588
      %v1590 = vpop.xlane.xlu0 %1589
      %v1591 = vsub.f32 %v1583, %v1587
      %v1592 = vsub.f32 %v1584, %v1590
      %v1593 = vmul.f32 %v1591, 1.442695
      %v1594 = vpow.pop %v1593
      %v1595 = vmul.f32 %v1592, 1.442695
      %v1596 = vpow.pop %v1595
      %v1597 = vsel %vm364, %v1594, 0.0
      %1598 = vadd.xlane.f32.xlu0 %v1597
      %v1599 = vpop.xlane.xlu0 %1598
      %v1600 = vsel %vm364, %v1596, 0.0
      %1601 = vadd.xlane.f32.xlu0 %v1600
      %v1602 = vpop.xlane.xlu0 %1601
      %v1603 = vrcp.pop %v1599
      %v1604 = vrcp.pop %v1602
      %v1605 = vmul.f32 %v1594, %v1603
      %v1606 = vmul.f32 %v1596, %v1604
      %v1607 = vpack.c.bf16 %v1606, %v1605
      %1608 = vrot.lane.b32.xlu0 %v1530, 112
      %v1609 = vpop.permute.xlu0 %1608
      %1610 = vrot.lane.b32.xlu0 %v1530, 80
      %v1611 = vpop.permute.xlu0 %1610
      %v1613 = vsel %vm364, %v1609, 0
      %v1616 = vsel %vm364, %v1611, 0
      %1618 = vmatprep.subr.bf16.mxu0 0
      %1619 = vmatpush1.bf16.xpose.msra.mxu0 %v1616
      %1620 = vmatprep.subr.bf16.mxu0 0
      %1621 = vmatpush1.bf16.xpose.msra.mxu0 0
      %1622 = vmatprep.subr.bf16.mxu0 0
      %1623 = vmatpush1.bf16.xpose.msra.mxu0 0
      %1624 = vmatprep.subr.bf16.mxu0 0
      %1625 = vmatpush1.bf16.xpose.msra.mxu0 0
      %1626 = vmatprep.subr.bf16.mxu0 0
      %1627 = vmatpush1.bf16.xpose.msra.mxu0 0
      %1628 = vmatprep.subr.bf16.mxu0 0
      %1629 = vmatpush1.bf16.xpose.msra.mxu0 0
      %1630 = vmatprep.subr.bf16.mxu0 0
      %1631 = vmatpush1.bf16.xpose.msra.mxu0 0
      %1632 = vmatprep.subr.bf16.mxu0 0
      %1633 = vmatpush1.bf16.xpose.msra.mxu0 0
      %1634 = vmatprep.subr.bf16.mxu0 0
      %1635 = vmatpush1.bf16.xpose.msra.mxu0 0
      %1636 = vmatprep.subr.bf16.mxu0 0
      %1637 = vmatpush1.bf16.xpose.msra.mxu0 0
      %1638 = vmatprep.subr.bf16.mxu0 0
      %1639 = vmatpush1.bf16.xpose.msra.mxu0 0
      %1640 = vmatprep.subr.bf16.mxu0 0
      %1641 = vmatpush1.bf16.xpose.msra.mxu0 0
      %1642 = vmatprep.subr.bf16.mxu0 0
      %1643 = vmatpush1.bf16.xpose.msra.mxu0 0
      %1644 = vmatprep.subr.bf16.mxu0 0
      %1645 = vmatpush1.bf16.xpose.msra.mxu0 0
      %1646 = vmatprep.subr.bf16.mxu0 0
      %1647 = vmatpush1.bf16.xpose.msra.mxu0 0
      %1648 = vmatprep.subr.bf16.mxu0 0
      %1649 = vmatpush1.bf16.xpose.msra.mxu0 0
      %1650 = vmatprep.mubr.bf16.mxu0 0
      %1651 = vmatmul.mubr.bf16.gmra.mrb[0].mxu0 %v1613
      %v1652 = vpop.f32.mrb[0].mxu0
      %v1653 = vadd.f32 0.0, %v1652
      %v1654 = vpop.f32.mrb[0].mxu0
      %v1655 = vpop.f32.mrb[0].mxu0
      %v1656 = vadd.f32 0.0, %v1655
      %v1657 = vpop.f32.mrb[0].mxu0
      %1658 = vdwg.mxu0
      %v1659 = vmul.f32 %v1653, 0.25
      %v1660 = vmul.f32 %v1656, 0.25
      %v1661 = vadd.f32 %v1659, %v291
      %v1662 = vadd.f32 %v1660, %v291
      %v1663 = vsel %vm364, %v1661, -inf
      %1664 = vmax.xlane.f32.xlu0 %v1663
      %v1665 = vpop.xlane.xlu0 %1664
      %v1666 = vsel %vm364, %v1662, -inf
      %1667 = vmax.xlane.f32.xlu0 %v1666
      %v1668 = vpop.xlane.xlu0 %1667
      %v1669 = vsub.f32 %v1661, %v1665
      %v1670 = vsub.f32 %v1662, %v1668
      %v1671 = vmul.f32 %v1669, 1.442695
      %v1672 = vpow.pop %v1671
      %v1673 = vmul.f32 %v1670, 1.442695
      %v1674 = vpow.pop %v1673
      %v1675 = vsel %vm364, %v1672, 0.0
      %1676 = vadd.xlane.f32.xlu0 %v1675
      %v1677 = vpop.xlane.xlu0 %1676
      %v1678 = vsel %vm364, %v1674, 0.0
      %1679 = vadd.xlane.f32.xlu0 %v1678
      %v1680 = vpop.xlane.xlu0 %1679
      %v1681 = vrcp.pop %v1677
      %v1682 = vrcp.pop %v1680
      %v1683 = vmul.f32 %v1672, %v1681
      %v1684 = vmul.f32 %v1674, %v1682
      %v1685 = vpack.c.bf16 %v1684, %v1683
      %1686 = vrot.lane.b32.xlu0 %v1530, 32
      %v1687 = vpop.permute.xlu0 %1686
      %v1690 = vsel %vm364, %v1685, 0
      %1692 = vmatprep.subr.bf16.mxu0 0
      %1693 = vmatpush1.bf16.msra.mxu0 %v1687
      %1694 = vmatprep.subr.bf16.mxu0 0
      %1695 = vmatpush1.bf16.msra.mxu0 0
      %1696 = vmatprep.subr.bf16.mxu0 0
      %1697 = vmatpush1.bf16.msra.mxu0 0
      %1698 = vmatprep.subr.bf16.mxu0 0
      %1699 = vmatpush1.bf16.msra.mxu0 0
      %1700 = vmatprep.subr.bf16.mxu0 0
      %1701 = vmatpush1.bf16.msra.mxu0 0
      %1702 = vmatprep.subr.bf16.mxu0 0
      %1703 = vmatpush1.bf16.msra.mxu0 0
      %1704 = vmatprep.subr.bf16.mxu0 0
      %1705 = vmatpush1.bf16.msra.mxu0 0
      %1706 = vmatprep.subr.bf16.mxu0 0
      %1707 = vmatpush1.bf16.msra.mxu0 0
      %1708 = vmatprep.subr.bf16.mxu0 0
      %1709 = vmatpush1.bf16.msra.mxu0 0
      %1710 = vmatprep.subr.bf16.mxu0 0
      %1711 = vmatpush1.bf16.msra.mxu0 0
      %1712 = vmatprep.subr.bf16.mxu0 0
      %1713 = vmatpush1.bf16.msra.mxu0 0
      %1714 = vmatprep.subr.bf16.mxu0 0
      %1715 = vmatpush1.bf16.msra.mxu0 0
      %1716 = vmatprep.subr.bf16.mxu0 0
      %1717 = vmatpush1.bf16.msra.mxu0 0
      %1718 = vmatprep.subr.bf16.mxu0 0
      %1719 = vmatpush1.bf16.msra.mxu0 0
      %1720 = vmatprep.subr.bf16.mxu0 0
      %1721 = vmatpush1.bf16.msra.mxu0 0
      %1722 = vmatprep.subr.bf16.mxu0 0
      %1723 = vmatpush1.bf16.msra.mxu0 0
      %1724 = vmatprep.mubr.bf16.mxu0 0
      %1725 = vmatmul.mubr.bf16.gmra.mrb[0].mxu0 %v1690
      %v1726 = vpop.f32.mrb[0].mxu0
      %v1727 = vadd.f32 0.0, %v1726
      %v1728 = vpop.f32.mrb[0].mxu0
      %v1729 = vpop.f32.mrb[0].mxu0
      %v1730 = vadd.f32 0.0, %v1729
      %v1731 = vpop.f32.mrb[0].mxu0
      %1732 = vdwg.mxu0
      %1733 = vrot.lane.b32.xlu0 %v1530, 64
      %v1734 = vpop.permute.xlu0 %1733
      %v1737 = vsel %vm364, %v1607, 0
      %1739 = vmatprep.subr.bf16.mxu0 0
      %1740 = vmatpush1.bf16.msra.mxu0 %v1734
      %1741 = vmatprep.subr.bf16.mxu0 0
      %1742 = vmatpush1.bf16.msra.mxu0 0
      %1743 = vmatprep.subr.bf16.mxu0 0
      %1744 = vmatpush1.bf16.msra.mxu0 0
      %1745 = vmatprep.subr.bf16.mxu0 0
      %1746 = vmatpush1.bf16.msra.mxu0 0
      %1747 = vmatprep.subr.bf16.mxu0 0
      %1748 = vmatpush1.bf16.msra.mxu0 0
      %1749 = vmatprep.subr.bf16.mxu0 0
      %1750 = vmatpush1.bf16.msra.mxu0 0
      %1751 = vmatprep.subr.bf16.mxu0 0
      %1752 = vmatpush1.bf16.msra.mxu0 0
      %1753 = vmatprep.subr.bf16.mxu0 0
      %1754 = vmatpush1.bf16.msra.mxu0 0
      %1755 = vmatprep.subr.bf16.mxu0 0
      %1756 = vmatpush1.bf16.msra.mxu0 0
      %1757 = vmatprep.subr.bf16.mxu0 0
      %1758 = vmatpush1.bf16.msra.mxu0 0
      %1759 = vmatprep.subr.bf16.mxu0 0
      %1760 = vmatpush1.bf16.msra.mxu0 0
      %1761 = vmatprep.subr.bf16.mxu0 0
      %1762 = vmatpush1.bf16.msra.mxu0 0
      %1763 = vmatprep.subr.bf16.mxu0 0
      %1764 = vmatpush1.bf16.msra.mxu0 0
      %1765 = vmatprep.subr.bf16.mxu0 0
      %1766 = vmatpush1.bf16.msra.mxu0 0
      %1767 = vmatprep.subr.bf16.mxu0 0
      %1768 = vmatpush1.bf16.msra.mxu0 0
      %1769 = vmatprep.subr.bf16.mxu0 0
      %1770 = vmatpush1.bf16.msra.mxu0 0
      %1771 = vmatprep.mubr.bf16.mxu0 0
      %1772 = vmatmul.mubr.bf16.gmra.mrb[0].mxu0 %v1737
      %v1773 = vpop.f32.mrb[0].mxu0
      %v1774 = vadd.f32 %v1727, %v1773
      %v1775 = vpop.f32.mrb[0].mxu0
      %v1776 = vpop.f32.mrb[0].mxu0
      %v1777 = vadd.f32 %v1730, %v1776
      %v1778 = vpop.f32.mrb[0].mxu0
      %1779 = vdwg.mxu0
      %v1780 = vlaneseq
      %v1781 = vshrl.u32 %v1780, 7
      %v1782 = vsub.s32 0, %v1781
      %v1783 = vrot.slane %v1463, %v1782
      %v1784 = vadd.f32 %v1774, %v1783
      %v1785 = vadd.f32 %v1777, %v1783
      %v1786 = vadd.f32 %v1458, %v1784
      %v1787 = vadd.f32 %v1459, %v1785
      %v1788 = vsel %vm315, %v1786, 0.0
      %1789 = vadd.xlane.f32.xlu0 %v1788
      %v1790 = vpop.xlane.xlu0 %1789
      %v1791 = vsel %vm315, %v1787, 0.0
      %1792 = vadd.xlane.f32.xlu0 %v1791
      %v1793 = vpop.xlane.xlu0 %1792
      %v1794 = vmul.f32 %v1790, %v625
      %v1795 = vmul.f32 %v1793, %v625
      %v1796 = vsub.f32 %v1786, %v1794
      %v1797 = vsub.f32 %v1787, %v1795
      %v1798 = vmul.f32 %v1796, %v1796
      %v1799 = vmul.f32 %v1797, %v1797
      %v1800 = vsel %vm315, %v1798, 0.0
      %1801 = vadd.xlane.f32.xlu0 %v1800
      %v1802 = vpop.xlane.xlu0 %1801
      %v1803 = vsel %vm315, %v1799, 0.0
      %1804 = vadd.xlane.f32.xlu0 %v1803
      %v1805 = vpop.xlane.xlu0 %1804
      %v1806 = vmul.f32 %v1802, %v625
      %v1807 = vmul.f32 %v1805, %v625
      %v1808 = vadd.f32 %v1806, 1e-05
      %v1809 = vadd.f32 %v1807, 1e-05
      %v1810 = vrsqrt.pop %v1808
      %v1811 = vrsqrt.pop %v1809
      %v1812 = vmul.f32 %v1796, %v1810
      %v1813 = vmul.f32 %v1797, %v1811
      %v1814 = vlaneseq
      %v1815 = vshrl.u32 %v1814, 7
      %v1816 = vsub.s32 1, %v1815
      %v1817 = vrot.slane %v1463, %v1816
      %v1818 = vmul.f32 %v1812, %v1817
      %v1819 = vmul.f32 %v1813, %v1817
      %v1820 = vlaneseq
      %v1821 = vshrl.u32 %v1820, 7
      %v1822 = vsub.s32 2, %v1821
      %v1823 = vrot.slane %v1463, %v1822
      %v1824 = vadd.f32 %v1818, %v1823
      %v1825 = vadd.f32 %v1819, %v1823
      %v1826 = vpack.c.bf16 %v1825, %v1824
      %s1827 = scalar_lea.vmem %s3, 32
      %v1828 = vld [vmem:[%s1827] sm:$0xf]
      %v1829 = vld [vmem:[%s1827 + $0x4] sm:$0xf]
      %v1830 = vld [vmem:[%s1827 + $0x8] sm:$0xf]
      %v1831 = vld [vmem:[%s1827 + $0xc] sm:$0xf]
      %v1832 = vlaneseq
      %v1833 = vshrl.u32 %v1832, 7
      %v1834 = vsub.s32 1, %v1833
      %v1835 = vrot.slane %v1461, %v1834
      %v1840 = vunpack.c.l.b16 %v1828
      %v1841 = vunpack.c.l.b16 %v1829
      %v1842 = vunpack.c.l.b16 %v1830
      %v1843 = vunpack.c.l.b16 %v1831
      %v1844 = vpack.c.b16 %v1841, %v1840
      %v1845 = vpack.c.b16 %v1843, %v1842
      %v1849 = vsel %vm315, %v1826, 0
      %1851 = vmatprep.subr.bf16.mxu0 0
      %1852 = vmatpush1.bf16.msra.mxu0 %v1844
      %1853 = vmatprep.subr.bf16.mxu0 0
      %1854 = vmatpush1.bf16.msra.mxu0 %v1845
      %1855 = vmatprep.subr.bf16.mxu0 0
      %1856 = vmatpush1.bf16.msra.mxu0 0
      %1857 = vmatprep.subr.bf16.mxu0 0
      %1858 = vmatpush1.bf16.msra.mxu0 0
      %1859 = vmatprep.subr.bf16.mxu0 0
      %1860 = vmatpush1.bf16.msra.mxu0 0
      %1861 = vmatprep.subr.bf16.mxu0 0
      %1862 = vmatpush1.bf16.msra.mxu0 0
      %1863 = vmatprep.subr.bf16.mxu0 0
      %1864 = vmatpush1.bf16.msra.mxu0 0
      %1865 = vmatprep.subr.bf16.mxu0 0
      %1866 = vmatpush1.bf16.msra.mxu0 0
      %1867 = vmatprep.subr.bf16.mxu0 0
      %1868 = vmatpush1.bf16.msra.mxu0 0
      %1869 = vmatprep.subr.bf16.mxu0 0
      %1870 = vmatpush1.bf16.msra.mxu0 0
      %1871 = vmatprep.subr.bf16.mxu0 0
      %1872 = vmatpush1.bf16.msra.mxu0 0
      %1873 = vmatprep.subr.bf16.mxu0 0
      %1874 = vmatpush1.bf16.msra.mxu0 0
      %1875 = vmatprep.subr.bf16.mxu0 0
      %1876 = vmatpush1.bf16.msra.mxu0 0
      %1877 = vmatprep.subr.bf16.mxu0 0
      %1878 = vmatpush1.bf16.msra.mxu0 0
      %1879 = vmatprep.subr.bf16.mxu0 0
      %1880 = vmatpush1.bf16.msra.mxu0 0
      %1881 = vmatprep.subr.bf16.mxu0 0
      %1882 = vmatpush1.bf16.msra.mxu0 0
      %1883 = vmatprep.mubr.bf16.mxu0 0
      %1884 = vmatmul.mubr.bf16.gmra.mrb[0].mxu0 %v1849
      %v1885 = vpop.f32.mrb[0].mxu0
      %v1886 = vadd.f32 %v1835, %v1885
      %v1887 = vpop.f32.mrb[0].mxu0
      %v1888 = vpop.f32.mrb[0].mxu0
      %v1889 = vadd.f32 %v1835, %v1888
      %v1890 = vpop.f32.mrb[0].mxu0
      %1891 = vdwg.mxu0
      %v1892 = vmax.f32 %v1886, 0.0
      %v1893 = vmax.f32 %v1889, 0.0
      %v1894 = vpack.c.bf16 %v1893, %v1892
      %s1895 = scalar_lea.vmem %s4, 128
      %v1896 = vld [vmem:[%s1895] sm:$0xf]
      %v1897 = vld [vmem:[%s1895 + $0x4] sm:$0xf]
      %v1898 = vld [vmem:[%s1895 + $0x8] sm:$0xf]
      %v1899 = vld [vmem:[%s1895 + $0xc] sm:$0xf]
      %v1900 = vld [vmem:[%s1895 + $0x10] sm:$0xf]
      %v1901 = vld [vmem:[%s1895 + $0x14] sm:$0xf]
      %v1902 = vld [vmem:[%s1895 + $0x18] sm:$0xf]
      %v1903 = vld [vmem:[%s1895 + $0x1c] sm:$0xf]
      %v1904 = vld [vmem:[%s1895 + $0x20] sm:$0xf]
      %v1905 = vld [vmem:[%s1895 + $0x24] sm:$0xf]
      %v1906 = vld [vmem:[%s1895 + $0x28] sm:$0xf]
      %v1907 = vld [vmem:[%s1895 + $0x2c] sm:$0xf]
      %v1908 = vld [vmem:[%s1895 + $0x30] sm:$0xf]
      %v1909 = vld [vmem:[%s1895 + $0x34] sm:$0xf]
      %v1910 = vld [vmem:[%s1895 + $0x38] sm:$0xf]
      %v1911 = vld [vmem:[%s1895 + $0x3c] sm:$0xf]
      %v1912 = vlaneseq
      %v1913 = vshrl.u32 %v1912, 7
      %v1914 = vsub.s32 5, %v1913
      %v1915 = vrot.slane %v1463, %v1914
      %v1932 = vunpack.c.l.b16 %v1896
      %v1933 = vunpack.c.l.b16 %v1897
      %v1934 = vunpack.c.l.b16 %v1898
      %v1935 = vunpack.c.l.b16 %v1899
      %v1936 = vunpack.c.l.b16 %v1900
      %v1937 = vunpack.c.l.b16 %v1901
      %v1938 = vunpack.c.l.b16 %v1902
      %v1939 = vunpack.c.l.b16 %v1903
      %v1940 = vunpack.c.l.b16 %v1904
      %v1941 = vunpack.c.l.b16 %v1905
      %v1942 = vunpack.c.l.b16 %v1906
      %v1943 = vunpack.c.l.b16 %v1907
      %v1944 = vunpack.c.l.b16 %v1908
      %v1945 = vunpack.c.l.b16 %v1909
      %v1946 = vunpack.c.l.b16 %v1910
      %v1947 = vunpack.c.l.b16 %v1911
      %v1948 = vpack.c.b16 %v1933, %v1932
      %v1949 = vpack.c.b16 %v1935, %v1934
      %v1950 = vpack.c.b16 %v1937, %v1936
      %v1951 = vpack.c.b16 %v1939, %v1938
      %v1952 = vpack.c.b16 %v1941, %v1940
      %v1953 = vpack.c.b16 %v1943, %v1942
      %v1954 = vpack.c.b16 %v1945, %v1944
      %v1955 = vpack.c.b16 %v1947, %v1946
      %1964 = vmatprep.subr.bf16.mxu0 0
      %1965 = vmatpush1.bf16.msra.mxu0 %v1948
      %1966 = vmatprep.subr.bf16.mxu0 0
      %1967 = vmatpush1.bf16.msra.mxu0 %v1949
      %1968 = vmatprep.subr.bf16.mxu0 0
      %1969 = vmatpush1.bf16.msra.mxu0 %v1950
      %1970 = vmatprep.subr.bf16.mxu0 0
      %1971 = vmatpush1.bf16.msra.mxu0 %v1951
      %1972 = vmatprep.subr.bf16.mxu0 0
      %1973 = vmatpush1.bf16.msra.mxu0 %v1952
      %1974 = vmatprep.subr.bf16.mxu0 0
      %1975 = vmatpush1.bf16.msra.mxu0 %v1953
      %1976 = vmatprep.subr.bf16.mxu0 0
      %1977 = vmatpush1.bf16.msra.mxu0 %v1954
      %1978 = vmatprep.subr.bf16.mxu0 0
      %1979 = vmatpush1.bf16.msra.mxu0 %v1955
      %1980 = vmatprep.subr.bf16.mxu0 0
      %1981 = vmatpush1.bf16.msra.mxu0 0
      %1982 = vmatprep.subr.bf16.mxu0 0
      %1983 = vmatpush1.bf16.msra.mxu0 0
      %1984 = vmatprep.subr.bf16.mxu0 0
      %1985 = vmatpush1.bf16.msra.mxu0 0
      %1986 = vmatprep.subr.bf16.mxu0 0
      %1987 = vmatpush1.bf16.msra.mxu0 0
      %1988 = vmatprep.subr.bf16.mxu0 0
      %1989 = vmatpush1.bf16.msra.mxu0 0
      %1990 = vmatprep.subr.bf16.mxu0 0
      %1991 = vmatpush1.bf16.msra.mxu0 0
      %1992 = vmatprep.subr.bf16.mxu0 0
      %1993 = vmatpush1.bf16.msra.mxu0 0
      %1994 = vmatprep.subr.bf16.mxu0 0
      %1995 = vmatpush1.bf16.msra.mxu0 0
      %1996 = vmatprep.mubr.bf16.mxu0 0
      %1997 = vmatmul.mubr.bf16.gmra.mrb[0].mxu0 %v1894
      %v1998 = vpop.f32.mrb[0].mxu0
      %v1999 = vadd.f32 %v1915, %v1998
      %v2000 = vpop.f32.mrb[0].mxu0
      %v2001 = vpop.f32.mrb[0].mxu0
      %v2002 = vadd.f32 %v1915, %v2001
      %v2003 = vpop.f32.mrb[0].mxu0
      %2004 = vdwg.mxu0
      %v2005 = vadd.f32 %v1824, %v1999
      %v2006 = vadd.f32 %v1825, %v2002
      %v2007 = vsel %vm315, %v2005, 0.0
      %2008 = vadd.xlane.f32.xlu0 %v2007
      %v2009 = vpop.xlane.xlu0 %2008
      %v2010 = vsel %vm315, %v2006, 0.0
      %2011 = vadd.xlane.f32.xlu0 %v2010
      %v2012 = vpop.xlane.xlu0 %2011
      %v2013 = vmul.f32 %v2009, %v625
      %v2014 = vmul.f32 %v2012, %v625
      %v2015 = vsub.f32 %v2005, %v2013
      %v2016 = vsub.f32 %v2006, %v2014
      %v2017 = vmul.f32 %v2015, %v2015
      %v2018 = vmul.f32 %v2016, %v2016
      %v2019 = vsel %vm315, %v2017, 0.0
      %2020 = vadd.xlane.f32.xlu0 %v2019
      %v2021 = vpop.xlane.xlu0 %2020
      %v2022 = vsel %vm315, %v2018, 0.0
      %2023 = vadd.xlane.f32.xlu0 %v2022
      %v2024 = vpop.xlane.xlu0 %2023
      %v2025 = vmul.f32 %v2021, %v625
      %v2026 = vmul.f32 %v2024, %v625
      %v2027 = vadd.f32 %v2025, 1e-05
      %v2028 = vadd.f32 %v2026, 1e-05
      %v2029 = vrsqrt.pop %v2027
      %v2030 = vrsqrt.pop %v2028
      %v2031 = vmul.f32 %v2015, %v2029
      %v2032 = vmul.f32 %v2016, %v2030
      %v2033 = vlaneseq
      %v2034 = vshrl.u32 %v2033, 7
      %v2035 = vsub.s32 3, %v2034
      %v2036 = vrot.slane %v1463, %v2035
      %v2037 = vmul.f32 %v2031, %v2036
      %v2038 = vmul.f32 %v2032, %v2036
      %v2039 = vlaneseq
      %v2040 = vshrl.u32 %v2039, 7
      %v2041 = vsub.s32 4, %v2040
      %v2042 = vrot.slane %v1463, %v2041
      %v2043 = vadd.f32 %v2037, %v2042
      %v2044 = vadd.f32 %v2038, %v2042
      %2045 = vst.msk [vmem:[%s278] sm:$0xff] %vm315, %v2043
      %vm2046 = vcmask 253952
      %2047 = vst.msk [vmem:[%s278 + $0x8] sm:$0x1] %vm2046, %v2044
      %p2048 = scmp.lt.s32.totalorder %s18, 1
      %s2049 = scalar_select %p2048, %s18, 1
      %s2050 = smul.addr %s2049, 2
      %s2051 = smul.addr %s2050, 8
      %s2052 = scalar_lea.vmem %s7, %s2051
      // Predicated region
      $region49: #{tpu_custom_call.1} parent=47 // pred_check
        %p2053 = pneg %p188
      $region50: #{tpu_custom_call.1} parent=47 // pred_check_branch
        %2055 = sbr.rel (%p2053) target = $region52
      $region51: #{tpu_custom_call.1} parent=47 // pred_region
        _
      $region52: #{tpu_custom_call.1} parent=47 // pred_fallthru
        _
    $region48: #{tpu_custom_call.1} parent=5 // pred_fallthru
      _
    %p2056 = scmp.le.s32.totalorder 2, %s13
    // Predicated region
    $region53: #{tpu_custom_call.1} parent=5 // pred_check
      %p2057 = pneg %p2056
    $region54: #{tpu_custom_call.1} parent=5 // pred_check_branch
      %2059 = sbr.rel (%p2057) target = $region56
    $region55: #{tpu_custom_call.1} parent=5 // pred_region
      %s2060 = ssub.s32 %s13, 2
      // Predicated region
      $region57: #{tpu_custom_call.1} parent=55 // pred_check
        %p2061 = pneg %p194
      $region58: #{tpu_custom_call.1} parent=55 // pred_check_branch
        %2063 = sbr.rel (%p2061) target = $region60
      $region59: #{tpu_custom_call.1} parent=55 // pred_region
        %p2064 = scmp.lt.s32.totalorder %s19, 1
        %s2065 = scalar_select %p2064, %s19, 1
        %s2066 = smul.addr %s2065, 2
        %s2067 = smul.addr %s2066, 8
        %s2068 = scalar_lea.vmem %s7, %s2067
      $region60: #{tpu_custom_call.1} parent=55 // pred_fallthru
        _
    $region56: #{tpu_custom_call.1} parent=5 // pred_fallthru
      _
  $region6: #{tpu_custom_call.1} parent=0 // loop_footer
    %s17 = sadd.s32 1, %s13
  $region7: #{tpu_custom_call.1} parent=0 // loop_footer_branch
    %12 = sbr.rel target = $region3
  $region8: #{tpu_custom_call.1} parent=0 // loop_exit
    _

</llo_original>
